<compile_context>
chip_gen: v6e
topology: v6e:2x2x1
jax: 0.10.0
libtpu: 0.0.40
codegen_flags: <defaults>
</compile_context>

<pallas_src>
import jax
import jax.numpy as jnp
from jax.experimental import pallas as pl
from jax.experimental.pallas import tpu as pltpu


def _round_up(x, m):
    return (x + m - 1) // m * m


def _pad_to(a, size, axis, fill=0):
    pad = size - a.shape[axis]
    if pad <= 0:
        return a
    widths = [(0, 0)] * a.ndim
    widths[axis] = (0, pad)
    return jnp.pad(a, widths, constant_values=fill)


def _prior_rnn_kernel(
    # per-step inputs (leading axis indexed by the decode-step grid)
    x_ref, eps_ref,
    # step-invariant inputs (constant index_map -> fetched once, VMEM-resident)
    enc_ref, lens_ref, z0_ref, h0_ref, c0_ref,
    wax_ref, ba_ref, v_ref, wae_ref,
    win_ref, wic_ref, bl_ref, wo_ref, bo_ref,
    # output: one packed lane-dense slab per step
    out_ref,
    # scratch (persists across grid steps)
    gin_sc, c_sc, proje_sc,
):
    f32 = jnp.float32
    bf = x_ref.dtype                      # bf16
    B, Dw = x_ref.shape
    _, T, A = enc_ref.shape
    H = h0_ref.shape[-1]
    E = eps_ref.shape[-1]
    N = v_ref.shape[-1]
    OUT = out_ref.shape[-1]
    step = pl.program_id(0)

    # ---- step 0: seed the recurrent state and precompute the step-invariant
    #      encoder projection enc @ W_attn_e (amortized over all decode steps). ----
    @pl.when(step == 0)
    def _init():
        gin_sc[:, Dw:Dw + E] = z0_ref[...].astype(bf)
        gin_sc[:, Dw + E:] = h0_ref[...].astype(bf)
        c_sc[...] = c0_ref[...]
        # reshape only collapses the leading (major) dims; done in f32 (cheap, step 0 only)
        # to keep the bf16 sublane packing out of the relayout path.
        enc2d = enc_ref[...].astype(f32).reshape(B * T, A).astype(bf)
        proje_sc[...] = jnp.dot(enc2d, wae_ref[...],
                                preferred_element_type=f32).reshape(B, T, N)

    # gate-input staging: [x | last_z | h_prev] packed in one bf16 scratch so the LSTM
    # input projection is a single fused MXU matmul.
    x = x_ref[...]                                                        # (B, Dw) bf16
    gin_sc[:, 0:Dw] = x

    # ---- additive attention: score[b,t] = v . tanh(Wx x_b + We e_{b,t} + b) ----
    proj_x = jnp.dot(x, wax_ref[...], preferred_element_type=f32) + ba_ref[...]   # (B, N)
    attn_h = jnp.tanh(proj_x[:, None, :] + proje_sc[...])                         # (B, T, N)
    score = jnp.sum(attn_h * v_ref[...][None, :, :], axis=-1)                     # (B, T)

    pos = jax.lax.broadcasted_iota(jnp.int32, (B, T), 1)
    score = jnp.where(pos < lens_ref[...], score, -1e10)
    # NOTE: a row with lens == 0 degrades to a uniform softmax over padded positions
    # (same caveat as the masked softmax in the reference); callers should pass lens >= 1.
    score = score - jnp.max(score, axis=-1, keepdims=True)
    p = jnp.exp(score)
    attn_w = p * pl.reciprocal(jnp.sum(p, axis=-1, keepdims=True), approx=True)   # (B, T)

    # context on the MXU: (B,1,T) x (B,T,A) -> (B,A)
    ctx = jnp.einsum("bqt,bta->bqa",
                     attn_w[:, None, :].astype(bf), enc_ref[...],
                     preferred_element_type=f32)[:, 0, :]                          # (B, A)

    # ---- one LSTM cell step (PyTorch gate order i, f, g, o), two fused MXU dots ----
    gates = (jnp.dot(gin_sc[...], win_ref[...], preferred_element_type=f32)
             + jnp.dot(ctx.astype(bf), wic_ref[...], preferred_element_type=f32)
             + bl_ref[...])                                                        # (B, 4H)
    # TODO(synk): for production sizes keep H a multiple of 128 (or use a gate-major
    # weight layout) so these narrow gate slices stop costing lane relayouts.
    i_g = jax.nn.sigmoid(gates[:, 0 * H:1 * H])
    f_g = jax.nn.sigmoid(gates[:, 1 * H:2 * H])
    g_g = jnp.tanh(gates[:, 2 * H:3 * H])
    o_g = jax.nn.sigmoid(gates[:, 3 * H:4 * H])
    c_new = f_g * c_sc[...] + i_g * g_g                # cell state kept in f32
    h_new = o_g * jnp.tanh(c_new)

    # ---- output head + reparameterized sample ----
    ml = jnp.dot(h_new.astype(bf), wo_ref[...], preferred_element_type=f32) + bo_ref[...]
    mean = ml[:, 0:E]
    logv = ml[:, E:2 * E]
    z_new = eps_ref[...] * jnp.exp(0.5 * logv) + mean

    # ---- carry recurrent state: z, h live in the bf16 matmul staging, c in f32 ----
    gin_sc[:, Dw:Dw + E] = z_new.astype(bf)
    gin_sc[:, Dw + E:] = h_new.astype(bf)
    c_sc[...] = c_new

    # ---- single packed, lane-dense (multiple-of-128 wide) output slab per step ----
    used = 3 * E + 2 * H + T
    out_ref[:, 0 * E:1 * E] = mean
    out_ref[:, 1 * E:2 * E] = logv
    out_ref[:, 2 * E:3 * E] = z_new
    out_ref[:, 3 * E:3 * E + H] = h_new
    out_ref[:, 3 * E + H:3 * E + 2 * H] = c_new
    out_ref[:, 3 * E + 2 * H:used] = attn_w
    if OUT > used:
        out_ref[:, used:] = jnp.zeros((B, OUT - used), f32)


def _prior_rnn_steps(x_steps, eps_steps, enc_mem, lens, z0, h0, c0, params):
    """Run S decode steps of PriorRNN inside ONE pallas_call.

    The step loop is the (sequential) grid axis; enc_mem and all weights use constant
    index_maps so they stay VMEM-resident across steps, and the h/c/last_z recurrence
    is carried in VMEM scratch.  Returns per-step (S, B, *) mean/log/z/h/c/attn.
    """
    S, B, Dw = x_steps.shape
    _, T, A = enc_mem.shape
    H = h0.shape[-1]
    E = z0.shape[-1]
    N = params["v_attn"].shape[-1]

    B_pad = max(8, _round_up(B, 8))               # fill all 8 sublanes of each vreg
    OUT = _round_up(3 * E + 2 * H + T, 128)       # packed lane-dense output slab width
    bf = jnp.bfloat16
    f32 = jnp.float32

    x_p = _pad_to(x_steps, B_pad, axis=1).astype(bf)                    # (S, Bp, Dw)
    eps_p = _pad_to(eps_steps, B_pad, axis=1).astype(f32)               # (S, Bp, E)
    enc_p = _pad_to(enc_mem, B_pad, axis=0).astype(bf)                  # (Bp, T, A)
    lens_p = _pad_to(lens.astype(jnp.int32).reshape(B, 1), B_pad, axis=0, fill=1)
    z0_p = _pad_to(z0, B_pad, axis=0).astype(f32)
    h0_p = _pad_to(h0, B_pad, axis=0).astype(f32)
    c0_p = _pad_to(c0, B_pad, axis=0).astype(f32)

    # Fused LSTM input projection for [x | last_z | h_prev]; the attention context keeps
    # its own matmul (it is produced inside the kernel).
    # NOTE for a PyTorch loader: weight_ih_l0 must be split along its input-feature axis in
    # [word | ctx | z] order and its rows kept in PyTorch's (i, f, g, o) gate order.
    w_in = jnp.concatenate(
        [params["w_ih_x"], params["w_ih_z"], params["w_hh"]], axis=0).astype(bf)
    wic = params["w_ih_c"].astype(bf)
    wax = params["w_attn_x"].astype(bf)
    wae = params["w_attn_e"].astype(bf)
    wo = params["w_out"].astype(bf)
    ba = params["b_attn"].astype(f32)
    v = params["v_attn"].astype(f32)
    bl = params["b_lstm"].astype(f32)
    bo = params["b_out"].astype(f32)

    def per_step(shape):      # leading axis indexed by the decode-step grid
        return pl.BlockSpec((None,) + shape[1:],
                            lambda s: (s,) + (0,) * (len(shape) - 1))

    def resident(shape):      # constant block index -> DMA'd once, stays in VMEM
        return pl.BlockSpec(shape, lambda s, _nd=len(shape): (0,) * _nd)

    in_arrays = (x_p, eps_p, enc_p, lens_p, z0_p, h0_p, c0_p,
                 wax, ba, v, wae, w_in, wic, bl, wo, bo)
    in_specs = [per_step(x_p.shape), per_step(eps_p.shape)] + \
               [resident(a.shape) for a in in_arrays[2:]]

    slab = pl.pallas_call(
        _prior_rnn_kernel,
        grid=(S,),
        in_specs=in_specs,
        out_specs=pl.BlockSpec((None, B_pad, OUT), lambda s: (s, 0, 0)),
        out_shape=jax.ShapeDtypeStruct((S, B_pad, OUT), f32),
        scratch_shapes=[
            pltpu.VMEM((B_pad, Dw + E + H), bf),   # [x | z | h] gate-input staging / carry
            pltpu.VMEM((B_pad, H), f32),           # c carry
            pltpu.VMEM((B_pad, T, N), f32),        # enc @ W_attn_e, computed once at step 0
        ],
        compiler_params=pltpu.CompilerParams(
            # The step axis is a true recurrence -> sequential.  For production batch sizes
            # add a leading "parallel" batch-block axis so v7x's two TensorCores share work.
            dimension_semantics=("arbitrary",),
        ),
    )(*in_arrays)

    # Un-packing / un-padding is cheap wrapper-side XLA slicing.
    mean = slab[:, :B, 0:E]
    logv = slab[:, :B, E:2 * E]
    z = slab[:, :B, 2 * E:3 * E]
    h = slab[:, :B, 3 * E:3 * E + H]
    c = slab[:, :B, 3 * E + H:3 * E + 2 * H]
    attn = slab[:, :B, 3 * E + 2 * H:3 * E + 2 * H + T]
    return mean, logv, z, h, c, attn


def prior_rnn_forward(word, enc_mem, hiddens_state, last_z, lens, params,
                      key=None, eps=None):
    """One decode step, faithful to PriorRNN.forward (LSTM, num_layers=1, unidirectional)."""
    B, T, A = enc_mem.shape
    h0, c0 = hiddens_state            # each (1, B, H), PyTorch layout
    h0, c0 = h0[0], c0[0]
    E = last_z.shape[-1]
    if eps is None:
        if key is None:
            key = jax.random.PRNGKey(0)
        eps = jax.random.normal(key, (B, E), jnp.float32)
    x_emb = jnp.take(params["emb"], word[:, 0], axis=0)        # embedding gather (XLA glue)
    mean, logv, z, h1, c1, attn = _prior_rnn_steps(
        x_emb[None], eps[None], enc_mem, lens, last_z, h0, c0, params)
    return {
        "mean": mean[0],
        "log": logv[0],
        "hiddens_state": (h1[0][None], c1[0][None]),
        "z": z[0],
        "attn_weight": attn[0],        # extra (not in the PyTorch return dict), for testing
    }


def prior_rnn_decode(words, enc_mem, hiddens_state, last_z, lens, params, key=None):
    """Teacher-forced multi-step decode: all steps run in ONE pallas_call (grid over steps),
    with last_z fed back autoregressively (last_z_t = z_{t-1})."""
    B, S = words.shape
    E = last_z.shape[-1]
    h0, c0 = hiddens_state
    h0, c0 = h0[0], c0[0]
    if key is None:
        key = jax.random.PRNGKey(0)
    eps = jax.random.normal(key, (S, B, E), jnp.float32)
    x_emb = jnp.take(params["emb"], words.T.reshape(-1), axis=0).reshape(S, B, -1)
    mean, logv, z, h, c, attn = _prior_rnn_steps(
        x_emb, eps, enc_mem, lens, last_z, h0, c0, params)
    return {
        "mean": jnp.swapaxes(mean, 0, 1),          # (B, S, E)
        "log": jnp.swapaxes(logv, 0, 1),
        "z": jnp.swapaxes(z, 0, 1),
        "hiddens_state": (h[-1][None], c[-1][None]),
        "attn_weight": jnp.swapaxes(attn, 0, 1),
    }


def init_params(key, vocab_size, word_dim, audiofeats, embed, hidden):
    """Deterministic synthetic parameter init (matching the module's shapes), stored f32."""
    ks = jax.random.split(key, 12)
    attn_n = audiofeats                   # Seq2SeqAttention attn_size = audiofeats_size
    s = 0.05
    return {
        "emb":      jax.random.normal(ks[0], (vocab_size, word_dim), jnp.float32) * s,
        # attention Linear(word_dim + audiofeats -> attn_n), split into x / enc parts (in, out)
        "w_attn_x": jax.random.normal(ks[1], (word_dim, attn_n), jnp.float32) * s,
        "w_attn_e": jax.random.normal(ks[2], (audiofeats, attn_n), jnp.float32) * s,
        "b_attn":   jnp.zeros((1, attn_n), jnp.float32),
        "v_attn":   jax.random.normal(ks[3], (1, attn_n), jnp.float32) * s,
        # LSTM: W_ih (word+ctx+z, 4H) split by input block, W_hh (H, 4H), fused bias
        "w_ih_x":   jax.random.normal(ks[4], (word_dim, 4 * hidden), jnp.float32) * s,
        "w_ih_c":   jax.random.normal(ks[5], (audiofeats, 4 * hidden), jnp.float32) * s,
        "w_ih_z":   jax.random.normal(ks[6], (embed, 4 * hidden), jnp.float32) * s,
        "w_hh":     jax.random.normal(ks[7], (hidden, 4 * hidden), jnp.float32) * s,
        "b_lstm":   jnp.zeros((1, 4 * hidden), jnp.float32),
        # output head: Linear(hidden -> 2*embed)
        "w_out":    jax.random.normal(ks[8], (hidden, 2 * embed), jnp.float32) * s,
        "b_out":    jnp.zeros((1, 2 * embed), jnp.float32),
    }


def _reference_forward(x_emb, enc_mem, lens, last_z, h0, c0, eps, params):
    """Pure-JAX f32 reference of one PriorRNN.forward step (for numerical checking)."""
    B, T, A = enc_mem.shape
    H = h0.shape[-1]
    E = last_z.shape[-1]
    proj = ((x_emb @ params["w_attn_x"])[:, None, :]
            + enc_mem @ params["w_attn_e"] + params["b_attn"])
    score = jnp.sum(jnp.tanh(proj) * params["v_attn"][None], axis=-1)
    mask = jnp.arange(T)[None, :] < lens[:, None]
    score = jnp.where(mask, score, -1e10)
    w = jax.nn.softmax(score, axis=-1)
    ctx = jnp.einsum("bt,bta->ba", w, enc_mem)
    gates = (x_emb @ params["w_ih_x"] + ctx @ params["w_ih_c"]
             + last_z @ params["w_ih_z"] + h0 @ params["w_hh"] + params["b_lstm"])
    i_g = jax.nn.sigmoid(gates[:, 0 * H:1 * H])
    f_g = jax.nn.sigmoid(gates[:, 1 * H:2 * H])
    g_g = jnp.tanh(gates[:, 2 * H:3 * H])
    o_g = jax.nn.sigmoid(gates[:, 3 * H:4 * H])
    c1 = f_g * c0 + i_g * g_g
    h1 = o_g * jnp.tanh(c1)
    ml = h1 @ params["w_out"] + params["b_out"]
    mean, logv = ml[:, :E], ml[:, E:]
    z = eps * jnp.exp(0.5 * logv) + mean
    return {"mean": mean, "log": logv, "z": z, "h": h1, "c": c1, "attn": w}


if __name__ == "__main__":
    # small shapes consistent with the module
    B, T = 2, 8
    vocab_size = 50
    word_dim = 32
    audiofeats = 64
    embed = 32
    hidden = 32            # kwargs hidden_size, kept small for the demo

    key = jax.random.PRNGKey(0)
    kp, kw, ke, kz, keps = jax.random.split(key, 5)
    params = init_params(kp, vocab_size, word_dim, audiofeats, embed, hidden)

    word = jax.random.randint(kw, (B, 1), 0, vocab_size)                  # (B, 1) token ids
    enc_mem = jax.random.normal(ke, (B, T, audiofeats), jnp.float32)      # (B, T, A)
    last_z = jax.random.normal(kz, (B, embed), jnp.float32)               # (B, E)
    lens = jnp.array([T, T // 2], dtype=jnp.int32)                        # valid lengths
    h0 = jnp.zeros((1, B, hidden), jnp.float32)
    c0 = jnp.zeros((1, B, hidden), jnp.float32)
    eps = jax.random.normal(keps, (B, embed), jnp.float32)                # threaded, not hard-coded

    # ---- single step (== PriorRNN.forward) ----
    out = prior_rnn_forward(word, enc_mem, (h0, c0), last_z, lens, params, eps=eps)
    out = jax.block_until_ready(out)

    assert out["mean"].shape == (B, embed)
    assert out["log"].shape == (B, embed)
    assert out["z"].shape == (B, embed)
    assert out["hiddens_state"][0].shape == (1, B, hidden)
    assert out["hiddens_state"][1].shape == (1, B, hidden)
    assert out["attn_weight"].shape == (B, T)
    assert bool(jnp.all(jnp.isfinite(out["z"])))
    # masked softmax sanity: weights of padded positions must be ~0
    assert float(jnp.sum(out["attn_weight"][1, T // 2:])) < 1e-6

    # numerical check vs. a pure-JAX f32 reference (loose tol: kernel matmuls run in bf16)
    x_emb = jnp.take(params["emb"], word[:, 0], axis=0)
    ref = _reference_forward(x_emb, enc_mem, lens, last_z, h0[0], c0[0], eps, params)
    checks = [(out["mean"], ref["mean"]), (out["log"], ref["log"]), (out["z"], ref["z"]),
              (out["hiddens_state"][0][0], ref["h"]), (out["hiddens_state"][1][0], ref["c"]),
              (out["attn_weight"], ref["attn"])]
    for got, want in checks:
        assert bool(jnp.allclose(got, want, atol=2e-2, rtol=2e-2)), "mismatch vs reference"

    # ---- multi-step decode: all steps in one pallas_call, weights/enc stay VMEM-resident ----
    S = 4
    words_seq = jax.random.randint(kw, (B, S), 0, vocab_size)
    dec = prior_rnn_decode(words_seq, enc_mem, (h0, c0), last_z, lens, params, key=keps)
    dec = jax.block_until_ready(dec)
    assert dec["z"].shape == (B, S, embed)
    assert dec["hiddens_state"][0].shape == (1, B, hidden)
    assert bool(jnp.all(jnp.isfinite(dec["z"])))

    print("KERNEL_OK")
</pallas_src>

<mosaic_0001>
module attributes {stable_mosaic.version = 11 : i64} {
  func.func @_prior_rnn_kernel(%arg0: i32, %arg1: memref<1x8x32xbf16, #tpu.memory_space<vmem>>, %arg2: memref<1x8x32xf32, #tpu.memory_space<vmem>>, %arg3: memref<8x8x64xbf16, #tpu.memory_space<vmem>>, %arg4: memref<8x1xi32, #tpu.memory_space<vmem>>, %arg5: memref<8x32xf32, #tpu.memory_space<vmem>>, %arg6: memref<8x32xf32, #tpu.memory_space<vmem>>, %arg7: memref<8x32xf32, #tpu.memory_space<vmem>>, %arg8: memref<32x64xbf16, #tpu.memory_space<vmem>>, %arg9: memref<1x64xf32, #tpu.memory_space<vmem>>, %arg10: memref<1x64xf32, #tpu.memory_space<vmem>>, %arg11: memref<64x64xbf16, #tpu.memory_space<vmem>>, %arg12: memref<96x128xbf16, #tpu.memory_space<vmem>>, %arg13: memref<64x128xbf16, #tpu.memory_space<vmem>>, %arg14: memref<1x128xf32, #tpu.memory_space<vmem>>, %arg15: memref<32x64xbf16, #tpu.memory_space<vmem>>, %arg16: memref<1x64xf32, #tpu.memory_space<vmem>>, %arg17: memref<1x8x256xf32, #tpu.memory_space<vmem>>, %arg18: memref<8x96xbf16, #tpu.memory_space<vmem>>, %arg19: memref<8x32xf32, #tpu.memory_space<vmem>>, %arg20: memref<8x8x64xf32, #tpu.memory_space<vmem>>) attributes {dimension_semantics = [#tpu.dimension_semantics<arbitrary>], iteration_bounds = array<i64: 1>, scalar_prefetch = 0 : i64, scratch_operands = 3 : i64, tpu.core_type = #tpu.core_type<tc>, window_params = [{transform_indices = @transform_0, window_bounds = array<i64: 1, 8, 32>}, {transform_indices = @transform_1, window_bounds = array<i64: 1, 8, 32>}, {pipeline_mode = #tpu.pipeline_mode<synchronous>, transform_indices = @transform_2, window_bounds = array<i64: 8, 8, 64>}, {pipeline_mode = #tpu.pipeline_mode<synchronous>, transform_indices = @transform_3, window_bounds = array<i64: 8, 1>}, {pipeline_mode = #tpu.pipeline_mode<synchronous>, transform_indices = @transform_4, window_bounds = array<i64: 8, 32>}, {pipeline_mode = #tpu.pipeline_mode<synchronous>, transform_indices = @transform_5, window_bounds = array<i64: 8, 32>}, {pipeline_mode = #tpu.pipeline_mode<synchronous>, transform_indices = @transform_6, window_bounds = array<i64: 8, 32>}, {pipeline_mode = #tpu.pipeline_mode<synchronous>, transform_indices = @transform_7, window_bounds = array<i64: 32, 64>}, {pipeline_mode = #tpu.pipeline_mode<synchronous>, transform_indices = @transform_8, window_bounds = array<i64: 1, 64>}, {pipeline_mode = #tpu.pipeline_mode<synchronous>, transform_indices = @transform_9, window_bounds = array<i64: 1, 64>}, {pipeline_mode = #tpu.pipeline_mode<synchronous>, transform_indices = @transform_10, window_bounds = array<i64: 64, 64>}, {pipeline_mode = #tpu.pipeline_mode<synchronous>, transform_indices = @transform_11, window_bounds = array<i64: 96, 128>}, {pipeline_mode = #tpu.pipeline_mode<synchronous>, transform_indices = @transform_12, window_bounds = array<i64: 64, 128>}, {pipeline_mode = #tpu.pipeline_mode<synchronous>, transform_indices = @transform_13, window_bounds = array<i64: 1, 128>}, {pipeline_mode = #tpu.pipeline_mode<synchronous>, transform_indices = @transform_14, window_bounds = array<i64: 32, 64>}, {pipeline_mode = #tpu.pipeline_mode<synchronous>, transform_indices = @transform_15, window_bounds = array<i64: 1, 64>}, {transform_indices = @transform_16, window_bounds = array<i64: 1, 8, 256>}]} {
    %c0_i32 = arith.constant 0 : i32
    %0 = arith.cmpi eq, %arg0, %c0_i32 : i32
    %1 = arith.extui %0 : i1 to i32
    %c0_i32_0 = arith.constant 0 : i32
    %2 = arith.cmpi ne, %1, %c0_i32_0 : i32
    scf.if %2 {
      %c0_70 = arith.constant 0 : index
      %c0_71 = arith.constant 0 : index
      %120 = vector.load %arg5[%c0_70, %c0_71] : memref<8x32xf32, #tpu.memory_space<vmem>>, vector<8x32xf32>
      %121 = arith.truncf %120 : vector<8x32xf32> to vector<8x32xbf16>
      %c0_72 = arith.constant 0 : index
      %c32_73 = arith.constant 32 : index
      %122 = vector.load %arg18[%c0_72, %c32_73] : memref<8x96xbf16, #tpu.memory_space<vmem>>, vector<8x32xbf16>
      tpu.vector_store %arg18[%c0_72, %c32_73], %121 {strides = array<i32>} : memref<8x96xbf16, #tpu.memory_space<vmem>>, vector<8x32xbf16>,
      %c0_74 = arith.constant 0 : index
      %c0_75 = arith.constant 0 : index
      %123 = vector.load %arg6[%c0_74, %c0_75] : memref<8x32xf32, #tpu.memory_space<vmem>>, vector<8x32xf32>
      %124 = arith.truncf %123 : vector<8x32xf32> to vector<8x32xbf16>
      %c0_76 = arith.constant 0 : index
      %c64_77 = arith.constant 64 : index
      %125 = vector.load %arg18[%c0_76, %c64_77] : memref<8x96xbf16, #tpu.memory_space<vmem>>, vector<8x32xbf16>
      tpu.vector_store %arg18[%c0_76, %c64_77], %124 {strides = array<i32>} : memref<8x96xbf16, #tpu.memory_space<vmem>>, vector<8x32xbf16>,
      %c0_78 = arith.constant 0 : index
      %c0_79 = arith.constant 0 : index
      %126 = vector.load %arg7[%c0_78, %c0_79] : memref<8x32xf32, #tpu.memory_space<vmem>>, vector<8x32xf32>
      %c0_80 = arith.constant 0 : index
      %c0_81 = arith.constant 0 : index
      %127 = vector.load %arg19[%c0_80, %c0_81] : memref<8x32xf32, #tpu.memory_space<vmem>>, vector<8x32xf32>
      tpu.vector_store %arg19[%c0_80, %c0_81], %126 {strides = array<i32>} : memref<8x32xf32, #tpu.memory_space<vmem>>, vector<8x32xf32>,
      %c0_82 = arith.constant 0 : index
      %c0_83 = arith.constant 0 : index
      %c0_84 = arith.constant 0 : index
      %128 = vector.load %arg3[%c0_82, %c0_83, %c0_84] : memref<8x8x64xbf16, #tpu.memory_space<vmem>>, vector<8x8x64xbf16>
      %129 = arith.extf %128 : vector<8x8x64xbf16> to vector<8x8x64xf32>
      %130 = vector.shape_cast %129 : vector<8x8x64xf32> to vector<64x64xf32>
      %131 = arith.truncf %130 : vector<64x64xf32> to vector<64x64xbf16>
      %c0_85 = arith.constant 0 : index
      %c0_86 = arith.constant 0 : index
      %132 = vector.load %arg11[%c0_85, %c0_86] : memref<64x64xbf16, #tpu.memory_space<vmem>>, vector<64x64xbf16>
      %cst_87 = arith.constant dense<0.000000e+00> : vector<64x64xf32>
      %133 = tpu.matmul %131, %132, %cst_87 {dimension_numbers = #tpu.dot_dimension_numbers<[1], [0], [0], [1], [0, 0, 1, 1], [], []>} : vector<64x64xbf16>, vector<64x64xbf16>, vector<64x64xf32> -> vector<64x64xf32>
      %134 = vector.shape_cast %133 : vector<64x64xf32> to vector<8x8x64xf32>
      %c0_88 = arith.constant 0 : index
      %c0_89 = arith.constant 0 : index
      %c0_90 = arith.constant 0 : index
      %135 = vector.load %arg20[%c0_88, %c0_89, %c0_90] : memref<8x8x64xf32, #tpu.memory_space<vmem>>, vector<8x8x64xf32>
      tpu.vector_store %arg20[%c0_88, %c0_89, %c0_90], %134 {strides = array<i32>} : memref<8x8x64xf32, #tpu.memory_space<vmem>>, vector<8x8x64xf32>,
    } else {
    }
    %c0 = arith.constant 0 : index
    %c0_1 = arith.constant 0 : index
    %c0_2 = arith.constant 0 : index
    %3 = vector.load %arg1[%c0, %c0_1, %c0_2] : memref<1x8x32xbf16, #tpu.memory_space<vmem>>, vector<1x8x32xbf16>
    %4 = vector.shape_cast %3 : vector<1x8x32xbf16> to vector<8x32xbf16>
    %c0_3 = arith.constant 0 : index
    %c0_4 = arith.constant 0 : index
    %5 = vector.load %arg18[%c0_3, %c0_4] : memref<8x96xbf16, #tpu.memory_space<vmem>>, vector<8x32xbf16>
    tpu.vector_store %arg18[%c0_3, %c0_4], %4 {strides = array<i32>} : memref<8x96xbf16, #tpu.memory_space<vmem>>, vector<8x32xbf16>,
    %c0_5 = arith.constant 0 : index
    %c0_6 = arith.constant 0 : index
    %6 = vector.load %arg8[%c0_5, %c0_6] : memref<32x64xbf16, #tpu.memory_space<vmem>>, vector<32x64xbf16>
    %cst = arith.constant dense<0.000000e+00> : vector<8x64xf32>
    %7 = tpu.matmul %4, %6, %cst {dimension_numbers = #tpu.dot_dimension_numbers<[1], [0], [0], [1], [0, 0, 1, 1], [], []>} : vector<8x32xbf16>, vector<32x64xbf16>, vector<8x64xf32> -> vector<8x64xf32>
    %c0_7 = arith.constant 0 : index
    %c0_8 = arith.constant 0 : index
    %8 = vector.load %arg9[%c0_7, %c0_8] : memref<1x64xf32, #tpu.memory_space<vmem>>, vector<1x64xf32>
    %9 = vector.broadcast %8 : vector<1x64xf32> to vector<8x64xf32>
    %10 = arith.addf %7, %9 : vector<8x64xf32>
    %11 = vector.shape_cast %10 : vector<8x64xf32> to vector<8x1x64xf32>
    %c0_9 = arith.constant 0 : index
    %c0_10 = arith.constant 0 : index
    %c0_11 = arith.constant 0 : index
    %12 = vector.load %arg20[%c0_9, %c0_10, %c0_11] : memref<8x8x64xf32, #tpu.memory_space<vmem>>, vector<8x8x64xf32>
    %13 = vector.broadcast %11 : vector<8x1x64xf32> to vector<8x8x64xf32>
    %14 = arith.addf %13, %12 : vector<8x8x64xf32>
    %15 = math.tanh %14 : vector<8x8x64xf32>
    %c0_12 = arith.constant 0 : index
    %c0_13 = arith.constant 0 : index
    %16 = vector.load %arg10[%c0_12, %c0_13] : memref<1x64xf32, #tpu.memory_space<vmem>>, vector<1x64xf32>
    %17 = vector.shape_cast %16 : vector<1x64xf32> to vector<1x1x64xf32>
    %18 = vector.broadcast %17 : vector<1x1x64xf32> to vector<8x8x64xf32>
    %19 = arith.mulf %15, %18 : vector<8x8x64xf32>
    %cst_14 = arith.constant dense<0.000000e+00> : vector<8x8xf32>
    %20 = vector.multi_reduction <add>, %19, %cst_14 [2] : vector<8x8x64xf32> to vector<8x8xf32>
    %21 = tpu.iota {dimensions = array<i32: 1>} : vector<8x8xi32>
    %c0_15 = arith.constant 0 : index
    %c0_16 = arith.constant 0 : index
    %22 = vector.load %arg4[%c0_15, %c0_16] : memref<8x1xi32, #tpu.memory_space<vmem>>, vector<8x1xi32>
    %23 = vector.broadcast %22 : vector<8x1xi32> to vector<8x8xi32>
    %24 = arith.cmpi slt, %21, %23 : vector<8x8xi32>
    %cst_17 = arith.constant -1.000000e+10 : f32
    %25 = vector.broadcast %cst_17 : f32 to vector<8x8xf32>
    %26 = arith.select %24, %20, %25 : vector<8x8xi1>, vector<8x8xf32>
    %cst_18 = arith.constant dense<0xFF800000> : vector<8xf32>
    %27 = vector.multi_reduction <maximumf>, %26, %cst_18 [1] : vector<8x8xf32> to vector<8xf32>
    %28 = vector.shape_cast %27 : vector<8xf32> to vector<8x1xf32>
    %29 = vector.broadcast %28 : vector<8x1xf32> to vector<8x8xf32>
    %30 = arith.subf %26, %29 : vector<8x8xf32>
    %31 = math.exp %30 : vector<8x8xf32>
    %cst_19 = arith.constant dense<0.000000e+00> : vector<8xf32>
    %32 = vector.multi_reduction <add>, %31, %cst_19 [1] : vector<8x8xf32> to vector<8xf32>
    %33 = vector.shape_cast %32 : vector<8xf32> to vector<8x1xf32>
    %34 = tpu.reciprocal %33 {approx = true} : vector<8x1xf32> -> vector<8x1xf32>
    %35 = vector.broadcast %34 : vector<8x1xf32> to vector<8x8xf32>
    %36 = arith.mulf %31, %35 : vector<8x8xf32>
    %37 = vector.shape_cast %36 : vector<8x8xf32> to vector<8x1x8xf32>
    %38 = arith.truncf %37 : vector<8x1x8xf32> to vector<8x1x8xbf16>
    %c0_20 = arith.constant 0 : index
    %c0_21 = arith.constant 0 : index
    %c0_22 = arith.constant 0 : index
    %39 = vector.load %arg3[%c0_20, %c0_21, %c0_22] : memref<8x8x64xbf16, #tpu.memory_space<vmem>>, vector<8x8x64xbf16>
    "tpu.trace_start"() <{level = 10 : i32, message = "bqt,bta->bqa"}> : () -> ()
    %cst_23 = arith.constant dense<0.000000e+00> : vector<8x1x64xf32>
    %40 = tpu.matmul %38, %39, %cst_23 {dimension_numbers = #tpu.dot_dimension_numbers<[2], [1], [1], [2], [0, 0, 0, 1, 1, 2], [0], [0]>} : vector<8x1x8xbf16>, vector<8x8x64xbf16>, vector<8x1x64xf32> -> vector<8x1x64xf32>
    "tpu.trace_stop"() : () -> ()
    %41 = vector.shape_cast %40 : vector<8x1x64xf32> to vector<8x64xf32>
    %c0_24 = arith.constant 0 : index
    %c0_25 = arith.constant 0 : index
    %42 = vector.load %arg18[%c0_24, %c0_25] : memref<8x96xbf16, #tpu.memory_space<vmem>>, vector<8x96xbf16>
    %c0_26 = arith.constant 0 : index
    %c0_27 = arith.constant 0 : index
    %43 = vector.load %arg12[%c0_26, %c0_27] : memref<96x128xbf16, #tpu.memory_space<vmem>>, vector<96x128xbf16>
    %cst_28 = arith.constant dense<0.000000e+00> : vector<8x128xf32>
    %44 = tpu.matmul %42, %43, %cst_28 {dimension_numbers = #tpu.dot_dimension_numbers<[1], [0], [0], [1], [0, 0, 1, 1], [], []>} : vector<8x96xbf16>, vector<96x128xbf16>, vector<8x128xf32> -> vector<8x128xf32>
    %45 = arith.truncf %41 : vector<8x64xf32> to vector<8x64xbf16>
    %c0_29 = arith.constant 0 : index
    %c0_30 = arith.constant 0 : index
    %46 = vector.load %arg13[%c0_29, %c0_30] : memref<64x128xbf16, #tpu.memory_space<vmem>>, vector<64x128xbf16>
    %cst_31 = arith.constant dense<0.000000e+00> : vector<8x128xf32>
    %47 = tpu.matmul %45, %46, %cst_31 {dimension_numbers = #tpu.dot_dimension_numbers<[1], [0], [0], [1], [0, 0, 1, 1], [], []>} : vector<8x64xbf16>, vector<64x128xbf16>, vector<8x128xf32> -> vector<8x128xf32>
    %48 = arith.addf %44, %47 : vector<8x128xf32>
    %c0_32 = arith.constant 0 : index
    %c0_33 = arith.constant 0 : index
    %49 = vector.load %arg14[%c0_32, %c0_33] : memref<1x128xf32, #tpu.memory_space<vmem>>, vector<1x128xf32>
    %50 = vector.broadcast %49 : vector<1x128xf32> to vector<8x128xf32>
    %51 = arith.addf %48, %50 : vector<8x128xf32>
    %52 = vector.extract_strided_slice %51 {offsets = [0, 0], sizes = [8, 32], strides = [1, 1]} : vector<8x128xf32> to vector<8x32xf32>
    %53 = arith.negf %52 : vector<8x32xf32>
    %54 = math.exp %53 : vector<8x32xf32>
    %cst_34 = arith.constant 1.000000e+00 : f32
    %55 = vector.broadcast %cst_34 : f32 to vector<8x32xf32>
    %56 = arith.addf %55, %54 : vector<8x32xf32>
    %57 = arith.divf %55, %56 : vector<8x32xf32>
    %58 = vector.extract_strided_slice %51 {offsets = [0, 32], sizes = [8, 32], strides = [1, 1]} : vector<8x128xf32> to vector<8x32xf32>
    %59 = arith.negf %58 : vector<8x32xf32>
    %60 = math.exp %59 : vector<8x32xf32>
    %cst_35 = arith.constant 1.000000e+00 : f32
    %61 = vector.broadcast %cst_35 : f32 to vector<8x32xf32>
    %62 = arith.addf %61, %60 : vector<8x32xf32>
    %63 = arith.divf %61, %62 : vector<8x32xf32>
    %64 = vector.extract_strided_slice %51 {offsets = [0, 64], sizes = [8, 32], strides = [1, 1]} : vector<8x128xf32> to vector<8x32xf32>
    %65 = math.tanh %64 : vector<8x32xf32>
    %66 = vector.extract_strided_slice %51 {offsets = [0, 96], sizes = [8, 32], strides = [1, 1]} : vector<8x128xf32> to vector<8x32xf32>
    %67 = arith.negf %66 : vector<8x32xf32>
    %68 = math.exp %67 : vector<8x32xf32>
    %cst_36 = arith.constant 1.000000e+00 : f32
    %69 = vector.broadcast %cst_36 : f32 to vector<8x32xf32>
    %70 = arith.addf %69, %68 : vector<8x32xf32>
    %71 = arith.divf %69, %70 : vector<8x32xf32>
    %c0_37 = arith.constant 0 : index
    %c0_38 = arith.constant 0 : index
    %72 = vector.load %arg19[%c0_37, %c0_38] : memref<8x32xf32, #tpu.memory_space<vmem>>, vector<8x32xf32>
    %73 = arith.mulf %63, %72 : vector<8x32xf32>
    %74 = arith.mulf %57, %65 : vector<8x32xf32>
    %75 = arith.addf %73, %74 : vector<8x32xf32>
    %76 = math.tanh %75 : vector<8x32xf32>
    %77 = arith.mulf %71, %76 : vector<8x32xf32>
    %78 = arith.truncf %77 : vector<8x32xf32> to vector<8x32xbf16>
    %c0_39 = arith.constant 0 : index
    %c0_40 = arith.constant 0 : index
    %79 = vector.load %arg15[%c0_39, %c0_40] : memref<32x64xbf16, #tpu.memory_space<vmem>>, vector<32x64xbf16>
    %cst_41 = arith.constant dense<0.000000e+00> : vector<8x64xf32>
    %80 = tpu.matmul %78, %79, %cst_41 {dimension_numbers = #tpu.dot_dimension_numbers<[1], [0], [0], [1], [0, 0, 1, 1], [], []>} : vector<8x32xbf16>, vector<32x64xbf16>, vector<8x64xf32> -> vector<8x64xf32>
    %c0_42 = arith.constant 0 : index
    %c0_43 = arith.constant 0 : index
    %81 = vector.load %arg16[%c0_42, %c0_43] : memref<1x64xf32, #tpu.memory_space<vmem>>, vector<1x64xf32>
    %82 = vector.broadcast %81 : vector<1x64xf32> to vector<8x64xf32>
    %83 = arith.addf %80, %82 : vector<8x64xf32>
    %84 = vector.extract_strided_slice %83 {offsets = [0, 0], sizes = [8, 32], strides = [1, 1]} : vector<8x64xf32> to vector<8x32xf32>
    %85 = vector.extract_strided_slice %83 {offsets = [0, 32], sizes = [8, 32], strides = [1, 1]} : vector<8x64xf32> to vector<8x32xf32>
    %c0_44 = arith.constant 0 : index
    %c0_45 = arith.constant 0 : index
    %c0_46 = arith.constant 0 : index
    %86 = vector.load %arg2[%c0_44, %c0_45, %c0_46] : memref<1x8x32xf32, #tpu.memory_space<vmem>>, vector<1x8x32xf32>
    %87 = vector.shape_cast %86 : vector<1x8x32xf32> to vector<8x32xf32>
    %cst_47 = arith.constant 5.000000e-01 : f32
    %88 = vector.broadcast %cst_47 : f32 to vector<8x32xf32>
    %89 = arith.mulf %88, %85 : vector<8x32xf32>
    %90 = math.exp %89 : vector<8x32xf32>
    %91 = arith.mulf %87, %90 : vector<8x32xf32>
    %92 = arith.addf %91, %84 : vector<8x32xf32>
    %93 = arith.truncf %92 : vector<8x32xf32> to vector<8x32xbf16>
    %c0_48 = arith.constant 0 : index
    %c32 = arith.constant 32 : index
    %94 = vector.load %arg18[%c0_48, %c32] : memref<8x96xbf16, #tpu.memory_space<vmem>>, vector<8x32xbf16>
    tpu.vector_store %arg18[%c0_48, %c32], %93 {strides = array<i32>} : memref<8x96xbf16, #tpu.memory_space<vmem>>, vector<8x32xbf16>,
    %95 = arith.truncf %77 : vector<8x32xf32> to vector<8x32xbf16>
    %c0_49 = arith.constant 0 : index
    %c64 = arith.constant 64 : index
    %96 = vector.load %arg18[%c0_49, %c64] : memref<8x96xbf16, #tpu.memory_space<vmem>>, vector<8x32xbf16>
    tpu.vector_store %arg18[%c0_49, %c64], %95 {strides = array<i32>} : memref<8x96xbf16, #tpu.memory_space<vmem>>, vector<8x32xbf16>,
    %c0_50 = arith.constant 0 : index
    %c0_51 = arith.constant 0 : index
    %97 = vector.load %arg19[%c0_50, %c0_51] : memref<8x32xf32, #tpu.memory_space<vmem>>, vector<8x32xf32>
    tpu.vector_store %arg19[%c0_50, %c0_51], %75 {strides = array<i32>} : memref<8x32xf32, #tpu.memory_space<vmem>>, vector<8x32xf32>,
    %c0_52 = arith.constant 0 : index
    %c0_53 = arith.constant 0 : index
    %c0_54 = arith.constant 0 : index
    %98 = vector.load %arg17[%c0_52, %c0_53, %c0_54] : memref<1x8x256xf32, #tpu.memory_space<vmem>>, vector<1x8x32xf32>
    %99 = vector.shape_cast %98 : vector<1x8x32xf32> to vector<8x32xf32>
    %100 = vector.shape_cast %84 : vector<8x32xf32> to vector<1x8x32xf32>
    tpu.vector_store %arg17[%c0_52, %c0_53, %c0_54], %100 {strides = array<i32>} : memref<1x8x256xf32, #tpu.memory_space<vmem>>, vector<1x8x32xf32>,
    %c0_55 = arith.constant 0 : index
    %c0_56 = arith.constant 0 : index
    %c32_57 = arith.constant 32 : index
    %101 = vector.load %arg17[%c0_55, %c0_56, %c32_57] : memref<1x8x256xf32, #tpu.memory_space<vmem>>, vector<1x8x32xf32>
    %102 = vector.shape_cast %101 : vector<1x8x32xf32> to vector<8x32xf32>
    %103 = vector.shape_cast %85 : vector<8x32xf32> to vector<1x8x32xf32>
    tpu.vector_store %arg17[%c0_55, %c0_56, %c32_57], %103 {strides = array<i32>} : memref<1x8x256xf32, #tpu.memory_space<vmem>>, vector<1x8x32xf32>,
    %c0_58 = arith.constant 0 : index
    %c0_59 = arith.constant 0 : index
    %c64_60 = arith.constant 64 : index
    %104 = vector.load %arg17[%c0_58, %c0_59, %c64_60] : memref<1x8x256xf32, #tpu.memory_space<vmem>>, vector<1x8x32xf32>
    %105 = vector.shape_cast %104 : vector<1x8x32xf32> to vector<8x32xf32>
    %106 = vector.shape_cast %92 : vector<8x32xf32> to vector<1x8x32xf32>
    tpu.vector_store %arg17[%c0_58, %c0_59, %c64_60], %106 {strides = array<i32>} : memref<1x8x256xf32, #tpu.memory_space<vmem>>, vector<1x8x32xf32>,
    %c0_61 = arith.constant 0 : index
    %c0_62 = arith.constant 0 : index
    %c96 = arith.constant 96 : index
    %107 = vector.load %arg17[%c0_61, %c0_62, %c96] : memref<1x8x256xf32, #tpu.memory_space<vmem>>, vector<1x8x32xf32>
    %108 = vector.shape_cast %107 : vector<1x8x32xf32> to vector<8x32xf32>
    %109 = vector.shape_cast %77 : vector<8x32xf32> to vector<1x8x32xf32>
    tpu.vector_store %arg17[%c0_61, %c0_62, %c96], %109 {strides = array<i32>} : memref<1x8x256xf32, #tpu.memory_space<vmem>>, vector<1x8x32xf32>,
    %c0_63 = arith.constant 0 : index
    %c0_64 = arith.constant 0 : index
    %c128 = arith.constant 128 : index
    %110 = vector.load %arg17[%c0_63, %c0_64, %c128] : memref<1x8x256xf32, #tpu.memory_space<vmem>>, vector<1x8x32xf32>
    %111 = vector.shape_cast %110 : vector<1x8x32xf32> to vector<8x32xf32>
    %112 = vector.shape_cast %75 : vector<8x32xf32> to vector<1x8x32xf32>
    tpu.vector_store %arg17[%c0_63, %c0_64, %c128], %112 {strides = array<i32>} : memref<1x8x256xf32, #tpu.memory_space<vmem>>, vector<1x8x32xf32>,
    %c0_65 = arith.constant 0 : index
    %c0_66 = arith.constant 0 : index
    %c160 = arith.constant 160 : index
    %113 = vector.load %arg17[%c0_65, %c0_66, %c160] : memref<1x8x256xf32, #tpu.memory_space<vmem>>, vector<1x8x8xf32>
    %114 = vector.shape_cast %113 : vector<1x8x8xf32> to vector<8x8xf32>
    %115 = vector.shape_cast %36 : vector<8x8xf32> to vector<1x8x8xf32>
    tpu.vector_store %arg17[%c0_65, %c0_66, %c160], %115 {strides = array<i32>} : memref<1x8x256xf32, #tpu.memory_space<vmem>>, vector<1x8x8xf32>,
    %cst_67 = arith.constant 0.000000e+00 : f32
    %116 = vector.broadcast %cst_67 : f32 to vector<8x88xf32>
    %c0_68 = arith.constant 0 : index
    %c0_69 = arith.constant 0 : index
    %c168 = arith.constant 168 : index
    %117 = vector.load %arg17[%c0_68, %c0_69, %c168] : memref<1x8x256xf32, #tpu.memory_space<vmem>>, vector<1x8x88xf32>
    %118 = vector.shape_cast %117 : vector<1x8x88xf32> to vector<8x88xf32>
    %119 = vector.shape_cast %116 : vector<8x88xf32> to vector<1x8x88xf32>
    tpu.vector_store %arg17[%c0_68, %c0_69, %c168], %119 {strides = array<i32>} : memref<1x8x256xf32, #tpu.memory_space<vmem>>, vector<1x8x88xf32>,
    return
  }
  func.func @transform_0(%arg0: i32) -> (i32, i32, i32) {
    %c0_i32 = arith.constant 0 : i32
    %c0_i32_0 = arith.constant 0 : i32
    %c0_i32_1 = arith.constant 0 : i32
    return %arg0, %c0_i32, %c0_i32_0 : i32, i32, i32
  }
  func.func @transform_1(%arg0: i32) -> (i32, i32, i32) {
    %c0_i32 = arith.constant 0 : i32
    %c0_i32_0 = arith.constant 0 : i32
    %c0_i32_1 = arith.constant 0 : i32
    return %arg0, %c0_i32, %c0_i32_0 : i32, i32, i32
  }
  func.func @transform_2(%arg0: i32) -> (i32, i32, i32) {
    %c0_i32 = arith.constant 0 : i32
    %c0_i32_0 = arith.constant 0 : i32
    %c0_i32_1 = arith.constant 0 : i32
    %c0_i32_2 = arith.constant 0 : i32
    return %c0_i32, %c0_i32_0, %c0_i32_1 : i32, i32, i32
  }
  func.func @transform_3(%arg0: i32) -> (i32, i32) {
    %c0_i32 = arith.constant 0 : i32
    %c0_i32_0 = arith.constant 0 : i32
    %c0_i32_1 = arith.constant 0 : i32
    return %c0_i32, %c0_i32_0 : i32, i32
  }
  func.func @transform_4(%arg0: i32) -> (i32, i32) {
    %c0_i32 = arith.constant 0 : i32
    %c0_i32_0 = arith.constant 0 : i32
    %c0_i32_1 = arith.constant 0 : i32
    return %c0_i32, %c0_i32_0 : i32, i32
  }
  func.func @transform_5(%arg0: i32) -> (i32, i32) {
    %c0_i32 = arith.constant 0 : i32
    %c0_i32_0 = arith.constant 0 : i32
    %c0_i32_1 = arith.constant 0 : i32
    return %c0_i32, %c0_i32_0 : i32, i32
  }
  func.func @transform_6(%arg0: i32) -> (i32, i32) {
    %c0_i32 = arith.constant 0 : i32
    %c0_i32_0 = arith.constant 0 : i32
    %c0_i32_1 = arith.constant 0 : i32
    return %c0_i32, %c0_i32_0 : i32, i32
  }
  func.func @transform_7(%arg0: i32) -> (i32, i32) {
    %c0_i32 = arith.constant 0 : i32
    %c0_i32_0 = arith.constant 0 : i32
    %c0_i32_1 = arith.constant 0 : i32
    return %c0_i32, %c0_i32_0 : i32, i32
  }
  func.func @transform_8(%arg0: i32) -> (i32, i32) {
    %c0_i32 = arith.constant 0 : i32
    %c0_i32_0 = arith.constant 0 : i32
    %c0_i32_1 = arith.constant 0 : i32
    return %c0_i32, %c0_i32_0 : i32, i32
  }
  func.func @transform_9(%arg0: i32) -> (i32, i32) {
    %c0_i32 = arith.constant 0 : i32
    %c0_i32_0 = arith.constant 0 : i32
    %c0_i32_1 = arith.constant 0 : i32
    return %c0_i32, %c0_i32_0 : i32, i32
  }
  func.func @transform_10(%arg0: i32) -> (i32, i32) {
    %c0_i32 = arith.constant 0 : i32
    %c0_i32_0 = arith.constant 0 : i32
    %c0_i32_1 = arith.constant 0 : i32
    return %c0_i32, %c0_i32_0 : i32, i32
  }
  func.func @transform_11(%arg0: i32) -> (i32, i32) {
    %c0_i32 = arith.constant 0 : i32
    %c0_i32_0 = arith.constant 0 : i32
    %c0_i32_1 = arith.constant 0 : i32
    return %c0_i32, %c0_i32_0 : i32, i32
  }
  func.func @transform_12(%arg0: i32) -> (i32, i32) {
    %c0_i32 = arith.constant 0 : i32
    %c0_i32_0 = arith.constant 0 : i32
    %c0_i32_1 = arith.constant 0 : i32
    return %c0_i32, %c0_i32_0 : i32, i32
  }
  func.func @transform_13(%arg0: i32) -> (i32, i32) {
    %c0_i32 = arith.constant 0 : i32
    %c0_i32_0 = arith.constant 0 : i32
    %c0_i32_1 = arith.constant 0 : i32
    return %c0_i32, %c0_i32_0 : i32, i32
  }
  func.func @transform_14(%arg0: i32) -> (i32, i32) {
    %c0_i32 = arith.constant 0 : i32
    %c0_i32_0 = arith.constant 0 : i32
    %c0_i32_1 = arith.constant 0 : i32
    return %c0_i32, %c0_i32_0 : i32, i32
  }
  func.func @transform_15(%arg0: i32) -> (i32, i32) {
    %c0_i32 = arith.constant 0 : i32
    %c0_i32_0 = arith.constant 0 : i32
    %c0_i32_1 = arith.constant 0 : i32
    return %c0_i32, %c0_i32_0 : i32, i32
  }
  func.func @transform_16(%arg0: i32) -> (i32, i32, i32) {
    %c0_i32 = arith.constant 0 : i32
    %c0_i32_0 = arith.constant 0 : i32
    %c0_i32_1 = arith.constant 0 : i32
    return %arg0, %c0_i32, %c0_i32_0 : i32, i32, i32
  }
}

</mosaic_0001>

<llo_original>
// kernel: tpu_custom_call.1
$region0: #{tpu_custom_call.1}
  #allocation0 [shape = 'u32[]', space=smem, size = 0x4, offset = 0x4, fixed_abs, tag = 'smem constant byte address 0x4 - core index']
  #allocation1 [shape = 'u32[144,128]{1,0:T(1,128)}', space=vmem, size = 0x12000, scoped, tag = 'internal scratch']
  #allocation2 [shape = 'bf16[8,96]{1,0:T(8,128)(2,1)}', space=vmem, size = 0x800, scoped, tag = 'scratch operand']
  #allocation3 [shape = 'f32[8,32]{1,0:T(8,128)}', space=vmem, size = 0x1000, scoped, tag = 'scratch operand']
  #allocation4 [shape = 'f32[8,8,64]{2,1,0:T(8,128)}', space=vmem, size = 0x8000, scoped, tag = 'scratch operand']
  %s0 = inlined_call_operand.hbm [shape: bf16[1,8,32], index: 0, kind: input, shape index: {}]
  %s1 = inlined_call_operand.hbm [shape: f32[1,8,32], index: 1, kind: input, shape index: {}]
  %s2 = inlined_call_operand.hbm [shape: bf16[8,8,64], index: 2, kind: input, shape index: {}]
  %s3 = inlined_call_operand.vmem [shape: s32[8,1], index: 3, kind: input, shape index: {}]
  %s4 = inlined_call_operand.hbm [shape: f32[8,32], index: 4, kind: input, shape index: {}]
  %s5 = inlined_call_operand.hbm [shape: f32[8,32], index: 5, kind: input, shape index: {}]
  %s6 = inlined_call_operand.hbm [shape: f32[8,32], index: 6, kind: input, shape index: {}]
  %s7 = inlined_call_operand.vmem [shape: bf16[32,64], index: 7, kind: input, shape index: {}]
  %s8 = inlined_call_operand.hbm [shape: f32[1,64], index: 8, kind: input, shape index: {}]
  %s9 = inlined_call_operand.hbm [shape: f32[1,64], index: 9, kind: input, shape index: {}]
  %s10 = inlined_call_operand.hbm [shape: bf16[64,64], index: 10, kind: input, shape index: {}]
  %s11 = inlined_call_operand.hbm [shape: bf16[96,128], index: 11, kind: input, shape index: {}]
  %s12 = inlined_call_operand.hbm [shape: bf16[64,128], index: 12, kind: input, shape index: {}]
  %s13 = inlined_call_operand.hbm [shape: f32[1,128], index: 13, kind: input, shape index: {}]
  %s14 = inlined_call_operand.vmem [shape: bf16[32,64], index: 14, kind: input, shape index: {}]
  %s15 = inlined_call_operand.vmem [shape: f32[1,64], index: 15, kind: input, shape index: {}]
  %s16 = inlined_call_operand.hbm [shape: f32[1,8,256], index: 16, kind: output, shape index: {}]
  %s17 = sld [smem:[#allocation0]]
  $region126: #{tpu_custom_call.1} parent=0
    _
  %s19 = ssub.s32 1, %s17
  %s20 = scalar_select 0, %s19, %s17
  $region1: #{tpu_custom_call.1} parent=0
    #allocation5 [shape = 'u8[2048]{0}', space=vmem, size = 0x800, scoped, tag = 'input window, operand 0, single buffered']
    #allocation6 [shape = 's32[1]{0}', space=sflag, size = 0x4, scoped, tag = 'scoped memory for tpu_custom_call.1']
    #allocation7 [shape = 's32[1]{0}', space=sflag, size = 0x4, scoped, tag = 'scoped memory for tpu_custom_call.1']
    #allocation8 [shape = 'u8[4096]{0}', space=vmem, size = 0x1000, scoped, tag = 'input window, operand 1, single buffered']
    #allocation9 [shape = 's32[1]{0}', space=sflag, size = 0x4, scoped, tag = 'scoped memory for tpu_custom_call.1']
    #allocation10 [shape = 'u8[16384]{0}', space=vmem, size = 0x4000, scoped, tag = 'input window, operand 2, single buffered']
    #allocation11 [shape = 'u8[4096]{0}', space=vmem, size = 0x1000, scoped, tag = 'input window, operand 4, single buffered']
    #allocation12 [shape = 's32[1]{0}', space=sflag, size = 0x4, scoped, tag = 'scoped memory for tpu_custom_call.1']
    #allocation13 [shape = 'u8[4096]{0}', space=vmem, size = 0x1000, scoped, tag = 'input window, operand 5, single buffered']
    #allocation14 [shape = 'u8[4096]{0}', space=vmem, size = 0x1000, scoped, tag = 'input window, operand 6, single buffered']
    #allocation15 [shape = 's32[1]{0}', space=sflag, size = 0x4, scoped, tag = 'scoped memory for tpu_custom_call.1']
    #allocation16 [shape = 'u8[512]{0}', space=vmem, size = 0x400, scoped, tag = 'input window, operand 8, single buffered']
    #allocation17 [shape = 'u8[512]{0}', space=vmem, size = 0x400, scoped, tag = 'input window, operand 9, single buffered']
    #allocation18 [shape = 's32[1]{0}', space=sflag, size = 0x4, scoped, tag = 'scoped memory for tpu_custom_call.1']
    #allocation19 [shape = 'u8[16384]{0}', space=vmem, size = 0x4000, scoped, tag = 'input window, operand 10, single buffered']
    #allocation20 [shape = 'u8[24576]{0}', space=vmem, size = 0x6000, scoped, tag = 'input window, operand 11, single buffered']
    #allocation21 [shape = 's32[1]{0}', space=sflag, size = 0x4, scoped, tag = 'scoped memory for tpu_custom_call.1']
    #allocation22 [shape = 'u8[16384]{0}', space=vmem, size = 0x4000, scoped, tag = 'input window, operand 12, single buffered']
    #allocation23 [shape = 'u8[512]{0}', space=vmem, size = 0x400, scoped, tag = 'input window, operand 13, single buffered']
    #allocation24 [shape = 's32[1]{0}', space=sflag, size = 0x4, scoped, tag = 'scoped memory for tpu_custom_call.1']
    #allocation25 [shape = 'u8[8192]{0}', space=vmem, size = 0x2000, scoped, tag = 'output window, operand 0, single buffered']
    %21 = vsyncpa [#allocation6], 0
    %22 = vsyncpa [#allocation9], 0
    %23 = vsyncpa [#allocation12], 0
    %24 = vsyncpa [#allocation15], 0
    %25 = vsyncpa [#allocation18], 0
    %26 = vsyncpa [#allocation21], 0
    %27 = vsyncpa [#allocation24], 0
    %28 = vsyncpa [#allocation7], 0
    // Predicated region
    $region2: #{tpu_custom_call.1} parent=1 // pred_check
      _
    $region3: #{tpu_custom_call.1} parent=1 // pred_check_branch
      %30 = sbr.rel (0) target = $region5
    $region4: #{tpu_custom_call.1} parent=1 // pred_region
      %s32 = ssub.s32 64, 64
      %33 = vsyncadd [#allocation6], %s32
      %s35 = sshll.u32 [#allocation5], 4
      %s36 = int_to_ptr.vmem [resolvable:$true] %s35
      %38 = dma.hbm_to_vmem [thread:$0]  %s0, 64, %s36, [#allocation6]
    $region5: #{tpu_custom_call.1} parent=1 // pred_fallthru
      _
    // Predicated region
    $region6: #{tpu_custom_call.1} parent=1 // pred_check
      _
    $region7: #{tpu_custom_call.1} parent=1 // pred_check_branch
      %40 = sbr.rel (0) target = $region9
    $region8: #{tpu_custom_call.1} parent=1 // pred_region
      %s42 = ssub.s32 128, 128
      %43 = vsyncadd [#allocation9], %s42
      %s45 = sshll.u32 [#allocation8], 4
      %s46 = int_to_ptr.vmem [resolvable:$true] %s45
      %48 = dma.hbm_to_vmem [thread:$0]  %s1, 128, %s46, [#allocation9]
    $region9: #{tpu_custom_call.1} parent=1 // pred_fallthru
      _
    // Predicated region
    $region10: #{tpu_custom_call.1} parent=1 // pred_check
      _
    $region11: #{tpu_custom_call.1} parent=1 // pred_check_branch
      %50 = sbr.rel (0) target = $region13
    $region12: #{tpu_custom_call.1} parent=1 // pred_region
      %s52 = ssub.s32 512, 512
      %53 = vsyncadd [#allocation9], %s52
      %s54 = sshll.u32 [#allocation10], 4
      %s55 = int_to_ptr.vmem [resolvable:$true] %s54
      %60 = dma.hbm_to_vmem [thread:$0]  %s2, 512, %s55, [#allocation9], 64, 64, 4
    $region13: #{tpu_custom_call.1} parent=1 // pred_fallthru
      _
    // Predicated region
    $region14: #{tpu_custom_call.1} parent=1 // pred_check
      _
    $region15: #{tpu_custom_call.1} parent=1 // pred_check_branch
      %62 = sbr.rel (0) target = $region17
    $region16: #{tpu_custom_call.1} parent=1 // pred_region
      _
    $region17: #{tpu_custom_call.1} parent=1 // pred_fallthru
      _
    // Predicated region
    $region18: #{tpu_custom_call.1} parent=1 // pred_check
      _
    $region19: #{tpu_custom_call.1} parent=1 // pred_check_branch
      %64 = sbr.rel (0) target = $region21
    $region20: #{tpu_custom_call.1} parent=1 // pred_region
      %s66 = ssub.s32 128, 128
      %67 = vsyncadd [#allocation12], %s66
      %s69 = sshll.u32 [#allocation11], 4
      %s70 = int_to_ptr.vmem [resolvable:$true] %s69
      %72 = dma.hbm_to_vmem [thread:$0]  %s4, 128, %s70, [#allocation12]
    $region21: #{tpu_custom_call.1} parent=1 // pred_fallthru
      _
    // Predicated region
    $region22: #{tpu_custom_call.1} parent=1 // pred_check
      _
    $region23: #{tpu_custom_call.1} parent=1 // pred_check_branch
      %74 = sbr.rel (0) target = $region25
    $region24: #{tpu_custom_call.1} parent=1 // pred_region
      %s76 = ssub.s32 128, 128
      %77 = vsyncadd [#allocation12], %s76
      %s79 = sshll.u32 [#allocation13], 4
      %s80 = int_to_ptr.vmem [resolvable:$true] %s79
      %82 = dma.hbm_to_vmem [thread:$0]  %s5, 128, %s80, [#allocation12]
    $region25: #{tpu_custom_call.1} parent=1 // pred_fallthru
      _
    // Predicated region
    $region26: #{tpu_custom_call.1} parent=1 // pred_check
      _
    $region27: #{tpu_custom_call.1} parent=1 // pred_check_branch
      %84 = sbr.rel (0) target = $region29
    $region28: #{tpu_custom_call.1} parent=1 // pred_region
      %s86 = ssub.s32 128, 128
      %87 = vsyncadd [#allocation15], %s86
      %s89 = sshll.u32 [#allocation14], 4
      %s90 = int_to_ptr.vmem [resolvable:$true] %s89
      %92 = dma.hbm_to_vmem [thread:$0]  %s6, 128, %s90, [#allocation15]
    $region29: #{tpu_custom_call.1} parent=1 // pred_fallthru
      _
    // Predicated region
    $region30: #{tpu_custom_call.1} parent=1 // pred_check
      _
    $region31: #{tpu_custom_call.1} parent=1 // pred_check_branch
      %94 = sbr.rel (0) target = $region33
    $region32: #{tpu_custom_call.1} parent=1 // pred_region
      _
    $region33: #{tpu_custom_call.1} parent=1 // pred_fallthru
      _
    // Predicated region
    $region34: #{tpu_custom_call.1} parent=1 // pred_check
      _
    $region35: #{tpu_custom_call.1} parent=1 // pred_check_branch
      %96 = sbr.rel (0) target = $region37
    $region36: #{tpu_custom_call.1} parent=1 // pred_region
      %s98 = ssub.s32 16, 16
      %99 = vsyncadd [#allocation15], %s98
      %s101 = sshll.u32 [#allocation16], 4
      %s102 = int_to_ptr.vmem [resolvable:$true] %s101
      %104 = dma.hbm_to_vmem [thread:$0]  %s8, 16, %s102, [#allocation15]
    $region37: #{tpu_custom_call.1} parent=1 // pred_fallthru
      _
    // Predicated region
    $region38: #{tpu_custom_call.1} parent=1 // pred_check
      _
    $region39: #{tpu_custom_call.1} parent=1 // pred_check_branch
      %106 = sbr.rel (0) target = $region41
    $region40: #{tpu_custom_call.1} parent=1 // pred_region
      %s108 = ssub.s32 16, 16
      %109 = vsyncadd [#allocation18], %s108
      %s111 = sshll.u32 [#allocation17], 4
      %s112 = int_to_ptr.vmem [resolvable:$true] %s111
      %114 = dma.hbm_to_vmem [thread:$0]  %s9, 16, %s112, [#allocation18]
    $region41: #{tpu_custom_call.1} parent=1 // pred_fallthru
      _
    // Predicated region
    $region42: #{tpu_custom_call.1} parent=1 // pred_check
      _
    $region43: #{tpu_custom_call.1} parent=1 // pred_check_branch
      %116 = sbr.rel (0) target = $region45
    $region44: #{tpu_custom_call.1} parent=1 // pred_region
      %s118 = ssub.s32 512, 512
      %119 = vsyncadd [#allocation18], %s118
      %s120 = sshll.u32 [#allocation19], 4
      %s121 = int_to_ptr.vmem [resolvable:$true] %s120
      %126 = dma.hbm_to_vmem [thread:$0]  %s10, 512, %s121, [#allocation18], 64, 64, 4
    $region45: #{tpu_custom_call.1} parent=1 // pred_fallthru
      _
    // Predicated region
    $region46: #{tpu_custom_call.1} parent=1 // pred_check
      _
    $region47: #{tpu_custom_call.1} parent=1 // pred_check_branch
      %128 = sbr.rel (0) target = $region49
    $region48: #{tpu_custom_call.1} parent=1 // pred_region
      %s130 = ssub.s32 768, 768
      %131 = vsyncadd [#allocation21], %s130
      %s132 = sshll.u32 [#allocation20], 4
      %s133 = int_to_ptr.vmem [resolvable:$true] %s132
      %138 = dma.hbm_to_vmem [thread:$0]  %s11, 768, %s133, [#allocation21], 64, 64, 4
    $region49: #{tpu_custom_call.1} parent=1 // pred_fallthru
      _
    // Predicated region
    $region50: #{tpu_custom_call.1} parent=1 // pred_check
      _
    $region51: #{tpu_custom_call.1} parent=1 // pred_check_branch
      %140 = sbr.rel (0) target = $region53
    $region52: #{tpu_custom_call.1} parent=1 // pred_region
      %s142 = ssub.s32 512, 512
      %143 = vsyncadd [#allocation21], %s142
      %s144 = sshll.u32 [#allocation22], 4
      %s145 = int_to_ptr.vmem [resolvable:$true] %s144
      %150 = dma.hbm_to_vmem [thread:$0]  %s12, 512, %s145, [#allocation21], 64, 64, 4
    $region53: #{tpu_custom_call.1} parent=1 // pred_fallthru
      _
    // Predicated region
    $region54: #{tpu_custom_call.1} parent=1 // pred_check
      _
    $region55: #{tpu_custom_call.1} parent=1 // pred_check_branch
      %152 = sbr.rel (0) target = $region57
    $region56: #{tpu_custom_call.1} parent=1 // pred_region
      %s154 = ssub.s32 16, 16
      %155 = vsyncadd [#allocation24], %s154
      %s157 = sshll.u32 [#allocation23], 4
      %s158 = int_to_ptr.vmem [resolvable:$true] %s157
      %160 = dma.hbm_to_vmem [thread:$0]  %s13, 16, %s158, [#allocation24]
    $region57: #{tpu_custom_call.1} parent=1 // pred_fallthru
      _
    // Predicated region
    $region58: #{tpu_custom_call.1} parent=1 // pred_check
      _
    $region59: #{tpu_custom_call.1} parent=1 // pred_check_branch
      %162 = sbr.rel (0) target = $region61
    $region60: #{tpu_custom_call.1} parent=1 // pred_region
      _
    $region61: #{tpu_custom_call.1} parent=1 // pred_fallthru
      _
    // Predicated region
    $region62: #{tpu_custom_call.1} parent=1 // pred_check
      _
    $region63: #{tpu_custom_call.1} parent=1 // pred_check_branch
      %164 = sbr.rel (0) target = $region65
    $region64: #{tpu_custom_call.1} parent=1 // pred_region
      _
    $region65: #{tpu_custom_call.1} parent=1 // pred_fallthru
      _
    // Predicated region
    $region66: #{tpu_custom_call.1} parent=1 // pred_check
      _
    $region67: #{tpu_custom_call.1} parent=1 // pred_check_branch
      %166 = sbr.rel (0) target = $region69
    $region68: #{tpu_custom_call.1} parent=1 // pred_region
      %167 = dma.done [#allocation6], 64
    $region69: #{tpu_custom_call.1} parent=1 // pred_fallthru
      _
    // Predicated region
    $region70: #{tpu_custom_call.1} parent=1 // pred_check
      _
    $region71: #{tpu_custom_call.1} parent=1 // pred_check_branch
      %169 = sbr.rel (0) target = $region73
    $region72: #{tpu_custom_call.1} parent=1 // pred_region
      %170 = dma.done [#allocation9], 128
    $region73: #{tpu_custom_call.1} parent=1 // pred_fallthru
      _
    // Predicated region
    $region74: #{tpu_custom_call.1} parent=1 // pred_check
      _
    $region75: #{tpu_custom_call.1} parent=1 // pred_check_branch
      %172 = sbr.rel (0) target = $region77
    $region76: #{tpu_custom_call.1} parent=1 // pred_region
      %173 = dma.done [#allocation9], 512
    $region77: #{tpu_custom_call.1} parent=1 // pred_fallthru
      _
    // Predicated region
    $region78: #{tpu_custom_call.1} parent=1 // pred_check
      _
    $region79: #{tpu_custom_call.1} parent=1 // pred_check_branch
      %175 = sbr.rel (0) target = $region81
    $region80: #{tpu_custom_call.1} parent=1 // pred_region
      %176 = dma.done [#allocation12], 128
    $region81: #{tpu_custom_call.1} parent=1 // pred_fallthru
      _
    // Predicated region
    $region82: #{tpu_custom_call.1} parent=1 // pred_check
      _
    $region83: #{tpu_custom_call.1} parent=1 // pred_check_branch
      %178 = sbr.rel (0) target = $region85
    $region84: #{tpu_custom_call.1} parent=1 // pred_region
      %179 = dma.done [#allocation12], 128
    $region85: #{tpu_custom_call.1} parent=1 // pred_fallthru
      _
    // Predicated region
    $region86: #{tpu_custom_call.1} parent=1 // pred_check
      _
    $region87: #{tpu_custom_call.1} parent=1 // pred_check_branch
      %181 = sbr.rel (0) target = $region89
    $region88: #{tpu_custom_call.1} parent=1 // pred_region
      %182 = dma.done [#allocation15], 128
    $region89: #{tpu_custom_call.1} parent=1 // pred_fallthru
      _
    // Predicated region
    $region90: #{tpu_custom_call.1} parent=1 // pred_check
      _
    $region91: #{tpu_custom_call.1} parent=1 // pred_check_branch
      %184 = sbr.rel (0) target = $region93
    $region92: #{tpu_custom_call.1} parent=1 // pred_region
      %185 = dma.done [#allocation15], 16
    $region93: #{tpu_custom_call.1} parent=1 // pred_fallthru
      _
    // Predicated region
    $region94: #{tpu_custom_call.1} parent=1 // pred_check
      _
    $region95: #{tpu_custom_call.1} parent=1 // pred_check_branch
      %187 = sbr.rel (0) target = $region97
    $region96: #{tpu_custom_call.1} parent=1 // pred_region
      %188 = dma.done [#allocation18], 16
    $region97: #{tpu_custom_call.1} parent=1 // pred_fallthru
      _
    // Predicated region
    $region98: #{tpu_custom_call.1} parent=1 // pred_check
      _
    $region99: #{tpu_custom_call.1} parent=1 // pred_check_branch
      %190 = sbr.rel (0) target = $region101
    $region100: #{tpu_custom_call.1} parent=1 // pred_region
      %191 = dma.done [#allocation18], 512
    $region101: #{tpu_custom_call.1} parent=1 // pred_fallthru
      _
    // Predicated region
    $region102: #{tpu_custom_call.1} parent=1 // pred_check
      _
    $region103: #{tpu_custom_call.1} parent=1 // pred_check_branch
      %193 = sbr.rel (0) target = $region105
    $region104: #{tpu_custom_call.1} parent=1 // pred_region
      %194 = dma.done [#allocation21], 768
    $region105: #{tpu_custom_call.1} parent=1 // pred_fallthru
      _
    // Predicated region
    $region106: #{tpu_custom_call.1} parent=1 // pred_check
      _
    $region107: #{tpu_custom_call.1} parent=1 // pred_check_branch
      %196 = sbr.rel (0) target = $region109
    $region108: #{tpu_custom_call.1} parent=1 // pred_region
      %197 = dma.done [#allocation21], 512
    $region109: #{tpu_custom_call.1} parent=1 // pred_fallthru
      _
    // Predicated region
    $region110: #{tpu_custom_call.1} parent=1 // pred_check
      _
    $region111: #{tpu_custom_call.1} parent=1 // pred_check_branch
      %199 = sbr.rel (0) target = $region113
    $region112: #{tpu_custom_call.1} parent=1 // pred_region
      %200 = dma.done [#allocation24], 16
    $region113: #{tpu_custom_call.1} parent=1 // pred_fallthru
      _
    %p202 = scmp.eq.s32.totalorder 0, 0
    // Predicated region
    $region114: #{tpu_custom_call.1} parent=1 // pred_check
      %p203 = pneg %p202
    $region115: #{tpu_custom_call.1} parent=1 // pred_check_branch
      %205 = sbr.rel (%p203) target = $region117
    $region116: #{tpu_custom_call.1} parent=1 // pred_region
      %v206 = vld [vmem:[#allocation11] sm:$0xff]
      %v207 = vpack.c.bf16 %v206, %v206
      %v209 = vunpack.c.l.b16 %v207
      %v210 = vpack.c.b16 %v209, %v209
      %211 = vrot.lane.b32.xlu0 %v210, 32
      %v212 = vpop.permute.xlu0 %211
      %vm214 = vcmask 519424
      %215 = vst.msk [vmem:[#allocation2] sm:$0xf] %vm214, %v212
      %v216 = vld [vmem:[#allocation13] sm:$0xff]
      %v217 = vpack.c.bf16 %v216, %v216
      %v219 = vunpack.c.l.b16 %v217
      %v220 = vpack.c.b16 %v219, %v219
      %221 = vrot.lane.b32.xlu0 %v220, 64
      %v222 = vpop.permute.xlu0 %221
      %vm224 = vcmask 781824
      %225 = vst.msk [vmem:[#allocation2] sm:$0xf] %vm224, %v222
      %v226 = vld [vmem:[#allocation14] sm:$0xff]
      %vm227 = vcmask 261120
      %228 = vst.msk [vmem:[#allocation3] sm:$0xff] %vm227, %v226
      %v229 = vld [vmem:[#allocation10] sm:$0xf]
      %v230 = vld [vmem:[#allocation10 + $0x4] sm:$0xf]
      %v231 = vld [vmem:[#allocation10 + $0x8] sm:$0xf]
      %v232 = vld [vmem:[#allocation10 + $0xc] sm:$0xf]
      %v233 = vld [vmem:[#allocation10 + $0x10] sm:$0xf]
      %v234 = vld [vmem:[#allocation10 + $0x14] sm:$0xf]
      %v235 = vld [vmem:[#allocation10 + $0x18] sm:$0xf]
      %v236 = vld [vmem:[#allocation10 + $0x1c] sm:$0xf]
      %v237 = vunpack.c.l.bf16 %v229
      %v238 = vunpack.c.l.bf16 %v230
      %v239 = vunpack.c.l.bf16 %v231
      %v240 = vunpack.c.l.bf16 %v232
      %v241 = vunpack.c.l.bf16 %v233
      %v242 = vunpack.c.l.bf16 %v234
      %v243 = vunpack.c.l.bf16 %v235
      %v244 = vunpack.c.l.bf16 %v236
      %v245 = vpack.c.bf16 %v238, %v237
      %v246 = vpack.c.bf16 %v240, %v239
      %v247 = vpack.c.bf16 %v242, %v241
      %v248 = vpack.c.bf16 %v244, %v243
      %v249 = vld [vmem:[#allocation19] sm:$0xf]
      %v250 = vld [vmem:[#allocation19 + $0x4] sm:$0xf]
      %v251 = vld [vmem:[#allocation19 + $0x8] sm:$0xf]
      %v252 = vld [vmem:[#allocation19 + $0xc] sm:$0xf]
      %v253 = vld [vmem:[#allocation19 + $0x10] sm:$0xf]
      %v254 = vld [vmem:[#allocation19 + $0x14] sm:$0xf]
      %v255 = vld [vmem:[#allocation19 + $0x18] sm:$0xf]
      %v256 = vld [vmem:[#allocation19 + $0x1c] sm:$0xf]
      %v265 = vunpack.c.l.b16 %v249
      %v266 = vunpack.c.l.b16 %v250
      %v267 = vunpack.c.l.b16 %v251
      %v268 = vunpack.c.l.b16 %v252
      %v269 = vunpack.c.l.b16 %v253
      %v270 = vunpack.c.l.b16 %v254
      %v271 = vunpack.c.l.b16 %v255
      %v272 = vunpack.c.l.b16 %v256
      %v273 = vpack.c.b16 %v266, %v265
      %v274 = vpack.c.b16 %v268, %v267
      %v275 = vpack.c.b16 %v270, %v269
      %v276 = vpack.c.b16 %v272, %v271
      %vm281 = vcmask 523264
      %v283 = vsel %vm281, %v245, 0
      %v286 = vsel %vm281, %v246, 0
      %v289 = vsel %vm281, %v247, 0
      %v292 = vsel %vm281, %v248, 0
      %294 = vmatprep.subr.bf16.mxu0 0
      %295 = vmatpush1.bf16.msra.mxu0 0
      %296 = vmatprep.subr.bf16.mxu0 0
      %297 = vmatpush1.bf16.msra.mxu0 0
      %298 = vmatprep.subr.bf16.mxu0 0
      %299 = vmatpush1.bf16.msra.mxu0 0
      %300 = vmatprep.subr.bf16.mxu0 0
      %301 = vmatpush1.bf16.msra.mxu0 0
      %302 = vmatprep.subr.bf16.mxu0 0
      %303 = vmatpush1.bf16.msra.mxu0 %v276
      %304 = vmatprep.subr.bf16.mxu0 0
      %305 = vmatpush1.bf16.msra.mxu0 %v275
      %306 = vmatprep.subr.bf16.mxu0 0
      %307 = vmatpush1.bf16.msra.mxu0 %v274
      %308 = vmatprep.subr.bf16.mxu0 0
      %309 = vmatpush1.bf16.msra.mxu0 %v273
      %310 = vmatprep.subr.bf16.mxu0 0
      %311 = vmatpush2.bf16.msra.mxu0 0
      %312 = vmatprep.subr.bf16.mxu0 0
      %313 = vmatpush2.bf16.msra.mxu0 0
      %314 = vmatprep.subr.bf16.mxu0 0
      %315 = vmatpush2.bf16.msra.mxu0 0
      %316 = vmatprep.subr.bf16.mxu0 0
      %317 = vmatpush2.bf16.msra.mxu0 0
      %318 = vmatprep.subr.bf16.mxu0 0
      %319 = vmatpush2.bf16.msra.mxu0 0
      %320 = vmatprep.subr.bf16.mxu0 0
      %321 = vmatpush2.bf16.msra.mxu0 0
      %322 = vmatprep.subr.bf16.mxu0 0
      %323 = vmatpush2.bf16.msra.mxu0 0
      %324 = vmatprep.subr.bf16.mxu0 0
      %325 = vmatpush2.bf16.msra.mxu0 0
      %326 = vmatprep.mubr.bf16.mxu0 0
      %327 = vmatmul.mubr.bf16.gmra.mxu0 %v283
      %v328 = vpop.f32.mrf.mxu0
      %v329 = vadd.f32 0.0, %v328
      %v330 = vpop.f32.mrf.mxu0
      %v331 = vpop.f32.mrf.mxu0
      %v332 = vadd.f32 0.0, %v331
      %v333 = vpop.f32.mrf.mxu0
      %334 = vmatprep.mubr.bf16.mxu0 0
      %335 = vmatmul.mubr.bf16.gmra.mxu0 %v286
      %v336 = vpop.f32.mrf.mxu0
      %v337 = vadd.f32 0.0, %v336
      %v338 = vpop.f32.mrf.mxu0
      %v339 = vpop.f32.mrf.mxu0
      %v340 = vadd.f32 0.0, %v339
      %v341 = vpop.f32.mrf.mxu0
      %342 = vmatprep.mubr.bf16.mxu0 0
      %343 = vmatmul.mubr.bf16.gmra.mxu0 %v289
      %v344 = vpop.f32.mrf.mxu0
      %v345 = vadd.f32 0.0, %v344
      %v346 = vpop.f32.mrf.mxu0
      %v347 = vpop.f32.mrf.mxu0
      %v348 = vadd.f32 0.0, %v347
      %v349 = vpop.f32.mrf.mxu0
      %350 = vmatprep.mubr.bf16.mxu0 0
      %351 = vmatmul.mubr.bf16.gmra.mxu0 %v292
      %v352 = vpop.f32.mrf.mxu0
      %v353 = vadd.f32 0.0, %v352
      %v354 = vpop.f32.mrf.mxu0
      %v355 = vpop.f32.mrf.mxu0
      %v356 = vadd.f32 0.0, %v355
      %v357 = vpop.f32.mrf.mxu0
      %358 = vdwg.mxu0
      %359 = vst.msk [vmem:[#allocation4] sm:$0xff] %vm281, %v329
      %360 = vst.msk [vmem:[#allocation4 + $0x8] sm:$0xff] %vm281, %v332
      %361 = vst.msk [vmem:[#allocation4 + $0x10] sm:$0xff] %vm281, %v337
      %362 = vst.msk [vmem:[#allocation4 + $0x18] sm:$0xff] %vm281, %v340
      %363 = vst.msk [vmem:[#allocation4 + $0x20] sm:$0xff] %vm281, %v345
      %364 = vst.msk [vmem:[#allocation4 + $0x28] sm:$0xff] %vm281, %v348
      %365 = vst.msk [vmem:[#allocation4 + $0x30] sm:$0xff] %vm281, %v353
      %366 = vst.msk [vmem:[#allocation4 + $0x38] sm:$0xff] %vm281, %v356
    $region117: #{tpu_custom_call.1} parent=1 // pred_fallthru
      _
    %v367 = vld [vmem:[#allocation5] sm:$0xf]
    %vm368 = vcmask 257024
    %369 = vst.msk [vmem:[#allocation2] sm:$0xf] %vm368, %v367
    %v370 = vld [vmem:[%s7] sm:$0xf]
    %v371 = vld [vmem:[%s7 + $0x4] sm:$0xf]
    %v372 = vld [vmem:[%s7 + $0x8] sm:$0xf]
    %v373 = vld [vmem:[%s7 + $0xc] sm:$0xf]
    %v374 = vld [vmem:[#allocation16] sm:$0x1]
    %v376 = vlaneseq
    %v377 = vshrl.u32 %v376, 7
    %v378 = vsub.s32 0, %v377
    %v379 = vrot.slane %v374, %v378
    %v385 = vunpack.c.l.b16 %v370
    %v386 = vunpack.c.l.b16 %v371
    %v387 = vunpack.c.l.b16 %v372
    %v388 = vunpack.c.l.b16 %v373
    %v389 = vpack.c.b16 %v386, %v385
    %v390 = vpack.c.b16 %v388, %v387
    %vm393 = vcmask 261120
    %v395 = vsel %vm393, %v367, 0
    %397 = vmatprep.subr.bf16.mxu0 0
    %398 = vmatpush1.bf16.msra.mxu0 0
    %399 = vmatprep.subr.bf16.mxu0 0
    %400 = vmatpush1.bf16.msra.mxu0 0
    %401 = vmatprep.subr.bf16.mxu0 0
    %402 = vmatpush1.bf16.msra.mxu0 0
    %403 = vmatprep.subr.bf16.mxu0 0
    %404 = vmatpush1.bf16.msra.mxu0 0
    %405 = vmatprep.subr.bf16.mxu0 0
    %406 = vmatpush1.bf16.msra.mxu0 0
    %407 = vmatprep.subr.bf16.mxu0 0
    %408 = vmatpush1.bf16.msra.mxu0 0
    %409 = vmatprep.subr.bf16.mxu0 0
    %410 = vmatpush1.bf16.msra.mxu0 %v390
    %411 = vmatprep.subr.bf16.mxu0 0
    %412 = vmatpush1.bf16.msra.mxu0 %v389
    %413 = vmatprep.subr.bf16.mxu0 0
    %414 = vmatpush2.bf16.msra.mxu0 0
    %415 = vmatprep.subr.bf16.mxu0 0
    %416 = vmatpush2.bf16.msra.mxu0 0
    %417 = vmatprep.subr.bf16.mxu0 0
    %418 = vmatpush2.bf16.msra.mxu0 0
    %419 = vmatprep.subr.bf16.mxu0 0
    %420 = vmatpush2.bf16.msra.mxu0 0
    %421 = vmatprep.subr.bf16.mxu0 0
    %422 = vmatpush2.bf16.msra.mxu0 0
    %423 = vmatprep.subr.bf16.mxu0 0
    %424 = vmatpush2.bf16.msra.mxu0 0
    %425 = vmatprep.subr.bf16.mxu0 0
    %426 = vmatpush2.bf16.msra.mxu0 0
    %427 = vmatprep.subr.bf16.mxu0 0
    %428 = vmatpush2.bf16.msra.mxu0 0
    %429 = vmatprep.mubr.bf16.mxu0 0
    %430 = vmatmul.mubr.bf16.gmra.mxu0 %v395
    %v431 = vpop.f32.mrf.mxu0
    %v432 = vadd.f32 %v379, %v431
    %v433 = vpop.f32.mrf.mxu0
    %v434 = vpop.f32.mrf.mxu0
    %v435 = vpop.f32.mrf.mxu0
    %436 = vdwg.mxu0
    %v438 = vcombine.high %v432, %v432
    %v440 = vunpack.c.l.s4 1966171168
    %v441 = vunpack.c.0.s8 %v440
    %v442 = vlaneseq
    %v443 = vshrl.u32 %v442, 7
    %v444 = vsub.s32 %v441, %v443
    %v445 = vrot.slane %v432, %v444
    %v447 = vunpack.c.l.s4 1966171168
    %v448 = vunpack.c.0.s8 %v447
    %v449 = vlaneseq
    %v450 = vshrl.u32 %v449, 7
    %v451 = vsub.s32 %v448, %v450
    %v452 = vrot.slane %v438, %v451
    %v453 = vcombine.high %v445, %v445
    %v454 = vcombine.high %v452, %v452
    %v456 = vunpack.c.l.s4 1966171168
    %v457 = vunpack.c.0.s8 %v456
    %v458 = vlaneseq
    %v459 = vshrl.u32 %v458, 7
    %v460 = vsub.s32 %v457, %v459
    %v461 = vrot.slane %v445, %v460
    %v463 = vunpack.c.l.s4 1966171168
    %v464 = vunpack.c.0.s8 %v463
    %v465 = vlaneseq
    %v466 = vshrl.u32 %v465, 7
    %v467 = vsub.s32 %v464, %v466
    %v468 = vrot.slane %v452, %v467
    %v470 = vunpack.c.l.s4 1966171168
    %v471 = vunpack.c.0.s8 %v470
    %v472 = vlaneseq
    %v473 = vshrl.u32 %v472, 7
    %v474 = vsub.s32 %v471, %v473
    %v475 = vrot.slane %v453, %v474
    %v477 = vunpack.c.l.s4 1966171168
    %v478 = vunpack.c.0.s8 %v477
    %v479 = vlaneseq
    %v480 = vshrl.u32 %v479, 7
    %v481 = vsub.s32 %v478, %v480
    %v482 = vrot.slane %v454, %v481
    %v483 = vcombine.high %v461, %v461
    %v484 = vcombine.high %v468, %v468
    %v485 = vcombine.high %v475, %v475
    %v486 = vcombine.high %v482, %v482
    %v487 = vld [vmem:[#allocation4] sm:$0xff]
    %v488 = vld [vmem:[#allocation4 + $0x8] sm:$0xff]
    %v489 = vld [vmem:[#allocation4 + $0x10] sm:$0xff]
    %v490 = vld [vmem:[#allocation4 + $0x18] sm:$0xff]
    %v491 = vld [vmem:[#allocation4 + $0x20] sm:$0xff]
    %v492 = vld [vmem:[#allocation4 + $0x28] sm:$0xff]
    %v493 = vld [vmem:[#allocation4 + $0x30] sm:$0xff]
    %v494 = vld [vmem:[#allocation4 + $0x38] sm:$0xff]
    %v495 = vlaneseq
    %v496 = vshrl.u32 %v495, 7
    %v497 = vsub.s32 0, %v496
    %v498 = vrot.slane %v461, %v497
    %v499 = vlaneseq
    %v500 = vshrl.u32 %v499, 7
    %v501 = vsub.s32 0, %v500
    %v502 = vrot.slane %v475, %v501
    %v503 = vlaneseq
    %v504 = vshrl.u32 %v503, 7
    %v505 = vsub.s32 0, %v504
    %v506 = vrot.slane %v483, %v505
    %v507 = vlaneseq
    %v508 = vshrl.u32 %v507, 7
    %v509 = vsub.s32 0, %v508
    %v510 = vrot.slane %v485, %v509
    %v511 = vlaneseq
    %v512 = vshrl.u32 %v511, 7
    %v513 = vsub.s32 0, %v512
    %v514 = vrot.slane %v468, %v513
    %v515 = vlaneseq
    %v516 = vshrl.u32 %v515, 7
    %v517 = vsub.s32 0, %v516
    %v518 = vrot.slane %v482, %v517
    %v519 = vlaneseq
    %v520 = vshrl.u32 %v519, 7
    %v521 = vsub.s32 0, %v520
    %v522 = vrot.slane %v484, %v521
    %v523 = vlaneseq
    %v524 = vshrl.u32 %v523, 7
    %v525 = vsub.s32 0, %v524
    %v526 = vrot.slane %v486, %v525
    %v535 = vadd.f32 %v498, %v487
    %v536 = vadd.f32 %v502, %v488
    %v537 = vadd.f32 %v506, %v489
    %v538 = vadd.f32 %v510, %v490
    %v539 = vadd.f32 %v514, %v491
    %v540 = vadd.f32 %v518, %v492
    %v541 = vadd.f32 %v522, %v493
    %v542 = vadd.f32 %v526, %v494
    %v543 = vtanh.pop %v535
    %v544 = vtanh.pop %v536
    %v545 = vtanh.pop %v537
    %v546 = vtanh.pop %v538
    %v547 = vtanh.pop %v539
    %v548 = vtanh.pop %v540
    %v549 = vtanh.pop %v541
    %v550 = vtanh.pop %v542
    %v551 = vld [vmem:[#allocation17] sm:$0x1]
    %v553 = vlaneseq
    %v554 = vshrl.u32 %v553, 7
    %v555 = vsub.s32 0, %v554
    %v556 = vrot.slane %v551, %v555
    %v558 = vmul.f32 %v543, %v556
    %v559 = vmul.f32 %v544, %v556
    %v560 = vmul.f32 %v545, %v556
    %v561 = vmul.f32 %v546, %v556
    %v562 = vmul.f32 %v547, %v556
    %v563 = vmul.f32 %v548, %v556
    %v564 = vmul.f32 %v549, %v556
    %v565 = vmul.f32 %v550, %v556
    %vm566 = vcmask 523264
    %v567 = vsel %vm566, %v558, 0.0
    %568 = vadd.xlane.f32.xlu0 %v567
    %v569 = vpop.xlane.xlu0 %568
    %v570 = vsel %vm566, %v559, 0.0
    %571 = vadd.xlane.f32.xlu0 %v570
    %v572 = vpop.xlane.xlu0 %571
    %v573 = vsel %vm566, %v560, 0.0
    %574 = vadd.xlane.f32.xlu0 %v573
    %v575 = vpop.xlane.xlu0 %574
    %v576 = vsel %vm566, %v561, 0.0
    %577 = vadd.xlane.f32.xlu0 %v576
    %v578 = vpop.xlane.xlu0 %577
    %v579 = vsel %vm566, %v562, 0.0
    %580 = vadd.xlane.f32.xlu0 %v579
    %v581 = vpop.xlane.xlu0 %580
    %v582 = vsel %vm566, %v563, 0.0
    %583 = vadd.xlane.f32.xlu0 %v582
    %v584 = vpop.xlane.xlu0 %583
    %v585 = vsel %vm566, %v564, 0.0
    %586 = vadd.xlane.f32.xlu0 %v585
    %v587 = vpop.xlane.xlu0 %586
    %v588 = vsel %vm566, %v565, 0.0
    %589 = vadd.xlane.f32.xlu0 %v588
    %v590 = vpop.xlane.xlu0 %589
    %v591 = vlaneseq
    %v592 = vand.u32 %v591, 127
    %v593 = vld [vmem:[%s3] sm:$0xff]
    %594 = vset.pattern.permute.xlu0 0
    %595 = vperm.xlu0 %594, %v593
    %v596 = vpop.permute.xlu0 %595
    %vm597 = vcmp.lt.s32.totalorder %v592, %v596
    %v606 = vlaneseq
    %v607 = vshrl.u32 %v606, 7
    %v608 = vsub.s32 %v592, %v607
    %v609 = vrot.slane %v569, %v608
    %v610 = vlaneseq
    %v611 = vshrl.u32 %v610, 7
    %v612 = vsub.s32 %v592, %v611
    %v613 = vrot.slane %v572, %v612
    %v614 = vlaneseq
    %v615 = vshrl.u32 %v614, 7
    %v616 = vsub.s32 %v592, %v615
    %v617 = vrot.slane %v575, %v616
    %v618 = vlaneseq
    %v619 = vshrl.u32 %v618, 7
    %v620 = vsub.s32 %v592, %v619
    %v621 = vrot.slane %v578, %v620
    %v622 = vlaneseq
    %v623 = vshrl.u32 %v622, 7
    %v624 = vsub.s32 %v592, %v623
    %v625 = vrot.slane %v581, %v624
    %v626 = vlaneseq
    %v627 = vshrl.u32 %v626, 7
    %v628 = vsub.s32 %v592, %v627
    %v629 = vrot.slane %v584, %v628
    %v630 = vlaneseq
    %v631 = vshrl.u32 %v630, 7
    %v632 = vsub.s32 %v592, %v631
    %v633 = vrot.slane %v587, %v632
    %v634 = vlaneseq
    %v635 = vshrl.u32 %v634, 7
    %v636 = vsub.s32 %v592, %v635
    %v637 = vrot.slane %v590, %v636
    %vm638 = vcmask 1041409
    %v639 = vsel %vm638, %v613, %v609
    %vm640 = vcmask 1042434
    %v641 = vsel %vm640, %v617, %v639
    %vm642 = vcmask 1043459
    %v643 = vsel %vm642, %v621, %v641
    %vm644 = vcmask 1044484
    %v645 = vsel %vm644, %v625, %v643
    %vm646 = vcmask 1045509
    %v647 = vsel %vm646, %v629, %v645
    %vm648 = vcmask 1046534
    %v649 = vsel %vm648, %v633, %v647
    %vm650 = vcmask 1047559
    %v651 = vsel %vm650, %v637, %v649
    %v653 = vsel %vm597, %v651, -1e+10
    %vm654 = vcmask 64512
    %v655 = vsel %vm654, %v653, -inf
    %656 = vmax.xlane.f32.xlu0 %v655
    %v657 = vpop.xlane.xlu0 %656
    %v658 = vsub.f32 %v653, %v657
    %v659 = vmul.f32 %v658, 1.442695
    %v660 = vpow.pop %v659
    %v661 = vsel %vm654, %v660, 0.0
    %662 = vadd.xlane.f32.xlu0 %v661
    %v663 = vpop.xlane.xlu0 %662
    %v664 = vrcp.pop %v663
    %v665 = vmul.f32 %v660, %v664
    %v667 = vcombine.high %v665, %v665
    %v669 = vunpack.c.l.s4 1966171168
    %v670 = vunpack.c.0.s8 %v669
    %v671 = vlaneseq
    %v672 = vshrl.u32 %v671, 7
    %v673 = vsub.s32 %v670, %v672
    %v674 = vrot.slane %v665, %v673
    %v676 = vunpack.c.l.s4 1966171168
    %v677 = vunpack.c.0.s8 %v676
    %v678 = vlaneseq
    %v679 = vshrl.u32 %v678, 7
    %v680 = vsub.s32 %v677, %v679
    %v681 = vrot.slane %v667, %v680
    %v682 = vcombine.high %v674, %v674
    %v683 = vcombine.high %v681, %v681
    %v685 = vunpack.c.l.s4 1966171168
    %v686 = vunpack.c.0.s8 %v685
    %v687 = vlaneseq
    %v688 = vshrl.u32 %v687, 7
    %v689 = vsub.s32 %v686, %v688
    %v690 = vrot.slane %v674, %v689
    %v692 = vunpack.c.l.s4 1966171168
    %v693 = vunpack.c.0.s8 %v692
    %v694 = vlaneseq
    %v695 = vshrl.u32 %v694, 7
    %v696 = vsub.s32 %v693, %v695
    %v697 = vrot.slane %v681, %v696
    %v699 = vunpack.c.l.s4 1966171168
    %v700 = vunpack.c.0.s8 %v699
    %v701 = vlaneseq
    %v702 = vshrl.u32 %v701, 7
    %v703 = vsub.s32 %v700, %v702
    %v704 = vrot.slane %v682, %v703
    %v706 = vunpack.c.l.s4 1966171168
    %v707 = vunpack.c.0.s8 %v706
    %v708 = vlaneseq
    %v709 = vshrl.u32 %v708, 7
    %v710 = vsub.s32 %v707, %v709
    %v711 = vrot.slane %v683, %v710
    %v712 = vcombine.high %v690, %v690
    %v713 = vcombine.high %v697, %v697
    %v714 = vcombine.high %v704, %v704
    %v715 = vcombine.high %v711, %v711
    %v724 = vpack.c.bf16 %v690, %v690
    %v725 = vpack.c.bf16 %v704, %v704
    %v726 = vpack.c.bf16 %v712, %v712
    %v727 = vpack.c.bf16 %v714, %v714
    %v728 = vpack.c.bf16 %v697, %v697
    %v729 = vpack.c.bf16 %v711, %v711
    %v730 = vpack.c.bf16 %v713, %v713
    %v731 = vpack.c.bf16 %v715, %v715
    %v732 = vld [vmem:[#allocation10] sm:$0xf]
    %v733 = vld [vmem:[#allocation10 + $0x4] sm:$0xf]
    %v734 = vld [vmem:[#allocation10 + $0x8] sm:$0xf]
    %v735 = vld [vmem:[#allocation10 + $0xc] sm:$0xf]
    %v736 = vld [vmem:[#allocation10 + $0x10] sm:$0xf]
    %v737 = vld [vmem:[#allocation10 + $0x14] sm:$0xf]
    %v738 = vld [vmem:[#allocation10 + $0x18] sm:$0xf]
    %v739 = vld [vmem:[#allocation10 + $0x1c] sm:$0xf]
    %v741 = vsel %vm654, %v724, 0
    %vm743 = vcmask 1043456
    %v745 = vsel %vm743, %v732, 0
    %747 = vmatprep.subr.bf16.mxu0 0
    %748 = vmatpush1.bf16.msra.mxu0 0
    %749 = vmatprep.subr.bf16.mxu0 0
    %750 = vmatpush1.bf16.msra.mxu0 0
    %751 = vmatprep.subr.bf16.mxu0 0
    %752 = vmatpush1.bf16.msra.mxu0 0
    %753 = vmatprep.subr.bf16.mxu0 0
    %754 = vmatpush1.bf16.msra.mxu0 0
    %755 = vmatprep.subr.bf16.mxu0 0
    %756 = vmatpush1.bf16.msra.mxu0 0
    %757 = vmatprep.subr.bf16.mxu0 0
    %758 = vmatpush1.bf16.msra.mxu0 0
    %759 = vmatprep.subr.bf16.mxu0 0
    %760 = vmatpush1.bf16.msra.mxu0 0
    %761 = vmatprep.subr.bf16.mxu0 0
    %762 = vmatpush1.bf16.msra.mxu0 %v745
    %763 = vmatprep.subr.bf16.mxu0 0
    %764 = vmatpush2.bf16.msra.mxu0 0
    %765 = vmatprep.subr.bf16.mxu0 0
    %766 = vmatpush2.bf16.msra.mxu0 0
    %767 = vmatprep.subr.bf16.mxu0 0
    %768 = vmatpush2.bf16.msra.mxu0 0
    %769 = vmatprep.subr.bf16.mxu0 0
    %770 = vmatpush2.bf16.msra.mxu0 0
    %771 = vmatprep.subr.bf16.mxu0 0
    %772 = vmatpush2.bf16.msra.mxu0 0
    %773 = vmatprep.subr.bf16.mxu0 0
    %774 = vmatpush2.bf16.msra.mxu0 0
    %775 = vmatprep.subr.bf16.mxu0 0
    %776 = vmatpush2.bf16.msra.mxu0 0
    %777 = vmatprep.subr.bf16.mxu0 0
    %778 = vmatpush2.bf16.msra.mxu0 0
    %779 = vmatprep.mubr.bf16.mxu0 0
    %780 = vmatmul.mubr.bf16.gmra.mxu0 %v741
    %v781 = vpop.f32.mrf.mxu0
    %v782 = vadd.f32 0.0, %v781
    %v783 = vpop.f32.mrf.mxu0
    %v784 = vpop.f32.mrf.mxu0
    %v785 = vpop.f32.mrf.mxu0
    %786 = vdwg.mxu0
    %v788 = vsel %vm654, %v725, 0
    %v791 = vsel %vm743, %v733, 0
    %793 = vmatprep.subr.bf16.mxu0 0
    %794 = vmatpush1.bf16.msra.mxu0 0
    %795 = vmatprep.subr.bf16.mxu0 0
    %796 = vmatpush1.bf16.msra.mxu0 0
    %797 = vmatprep.subr.bf16.mxu0 0
    %798 = vmatpush1.bf16.msra.mxu0 0
    %799 = vmatprep.subr.bf16.mxu0 0
    %800 = vmatpush1.bf16.msra.mxu0 0
    %801 = vmatprep.subr.bf16.mxu0 0
    %802 = vmatpush1.bf16.msra.mxu0 0
    %803 = vmatprep.subr.bf16.mxu0 0
    %804 = vmatpush1.bf16.msra.mxu0 0
    %805 = vmatprep.subr.bf16.mxu0 0
    %806 = vmatpush1.bf16.msra.mxu0 0
    %807 = vmatprep.subr.bf16.mxu0 0
    %808 = vmatpush1.bf16.msra.mxu0 %v791
    %809 = vmatprep.subr.bf16.mxu0 0
    %810 = vmatpush2.bf16.msra.mxu0 0
    %811 = vmatprep.subr.bf16.mxu0 0
    %812 = vmatpush2.bf16.msra.mxu0 0
    %813 = vmatprep.subr.bf16.mxu0 0
    %814 = vmatpush2.bf16.msra.mxu0 0
    %815 = vmatprep.subr.bf16.mxu0 0
    %816 = vmatpush2.bf16.msra.mxu0 0
    %817 = vmatprep.subr.bf16.mxu0 0
    %818 = vmatpush2.bf16.msra.mxu0 0
    %819 = vmatprep.subr.bf16.mxu0 0
    %820 = vmatpush2.bf16.msra.mxu0 0
    %821 = vmatprep.subr.bf16.mxu0 0
    %822 = vmatpush2.bf16.msra.mxu0 0
    %823 = vmatprep.subr.bf16.mxu0 0
    %824 = vmatpush2.bf16.msra.mxu0 0
    %825 = vmatprep.mubr.bf16.mxu0 0
    %826 = vmatmul.mubr.bf16.gmra.mxu0 %v788
    %v827 = vpop.f32.mrf.mxu0
    %v828 = vadd.f32 0.0, %v827
    %v829 = vpop.f32.mrf.mxu0
    %v830 = vpop.f32.mrf.mxu0
    %v831 = vpop.f32.mrf.mxu0
    %832 = vdwg.mxu0
    %v834 = vsel %vm654, %v726, 0
    %v837 = vsel %vm743, %v734, 0
    %839 = vmatprep.subr.bf16.mxu0 0
    %840 = vmatpush1.bf16.msra.mxu0 0
    %841 = vmatprep.subr.bf16.mxu0 0
    %842 = vmatpush1.bf16.msra.mxu0 0
    %843 = vmatprep.subr.bf16.mxu0 0
    %844 = vmatpush1.bf16.msra.mxu0 0
    %845 = vmatprep.subr.bf16.mxu0 0
    %846 = vmatpush1.bf16.msra.mxu0 0
    %847 = vmatprep.subr.bf16.mxu0 0
    %848 = vmatpush1.bf16.msra.mxu0 0
    %849 = vmatprep.subr.bf16.mxu0 0
    %850 = vmatpush1.bf16.msra.mxu0 0
    %851 = vmatprep.subr.bf16.mxu0 0
    %852 = vmatpush1.bf16.msra.mxu0 0
    %853 = vmatprep.subr.bf16.mxu0 0
    %854 = vmatpush1.bf16.msra.mxu0 %v837
    %855 = vmatprep.subr.bf16.mxu0 0
    %856 = vmatpush2.bf16.msra.mxu0 0
    %857 = vmatprep.subr.bf16.mxu0 0
    %858 = vmatpush2.bf16.msra.mxu0 0
    %859 = vmatprep.subr.bf16.mxu0 0
    %860 = vmatpush2.bf16.msra.mxu0 0
    %861 = vmatprep.subr.bf16.mxu0 0
    %862 = vmatpush2.bf16.msra.mxu0 0
    %863 = vmatprep.subr.bf16.mxu0 0
    %864 = vmatpush2.bf16.msra.mxu0 0
    %865 = vmatprep.subr.bf16.mxu0 0
    %866 = vmatpush2.bf16.msra.mxu0 0
    %867 = vmatprep.subr.bf16.mxu0 0
    %868 = vmatpush2.bf16.msra.mxu0 0
    %869 = vmatprep.subr.bf16.mxu0 0
    %870 = vmatpush2.bf16.msra.mxu0 0
    %871 = vmatprep.mubr.bf16.mxu0 0
    %872 = vmatmul.mubr.bf16.gmra.mxu0 %v834
    %v873 = vpop.f32.mrf.mxu0
    %v874 = vadd.f32 0.0, %v873
    %v875 = vpop.f32.mrf.mxu0
    %v876 = vpop.f32.mrf.mxu0
    %v877 = vpop.f32.mrf.mxu0
    %878 = vdwg.mxu0
    %v880 = vsel %vm654, %v727, 0
    %v883 = vsel %vm743, %v735, 0
    %885 = vmatprep.subr.bf16.mxu0 0
    %886 = vmatpush1.bf16.msra.mxu0 0
    %887 = vmatprep.subr.bf16.mxu0 0
    %888 = vmatpush1.bf16.msra.mxu0 0
    %889 = vmatprep.subr.bf16.mxu0 0
    %890 = vmatpush1.bf16.msra.mxu0 0
    %891 = vmatprep.subr.bf16.mxu0 0
    %892 = vmatpush1.bf16.msra.mxu0 0
    %893 = vmatprep.subr.bf16.mxu0 0
    %894 = vmatpush1.bf16.msra.mxu0 0
    %895 = vmatprep.subr.bf16.mxu0 0
    %896 = vmatpush1.bf16.msra.mxu0 0
    %897 = vmatprep.subr.bf16.mxu0 0
    %898 = vmatpush1.bf16.msra.mxu0 0
    %899 = vmatprep.subr.bf16.mxu0 0
    %900 = vmatpush1.bf16.msra.mxu0 %v883
    %901 = vmatprep.subr.bf16.mxu0 0
    %902 = vmatpush2.bf16.msra.mxu0 0
    %903 = vmatprep.subr.bf16.mxu0 0
    %904 = vmatpush2.bf16.msra.mxu0 0
    %905 = vmatprep.subr.bf16.mxu0 0
    %906 = vmatpush2.bf16.msra.mxu0 0
    %907 = vmatprep.subr.bf16.mxu0 0
    %908 = vmatpush2.bf16.msra.mxu0 0
    %909 = vmatprep.subr.bf16.mxu0 0
    %910 = vmatpush2.bf16.msra.mxu0 0
    %911 = vmatprep.subr.bf16.mxu0 0
    %912 = vmatpush2.bf16.msra.mxu0 0
    %913 = vmatprep.subr.bf16.mxu0 0
    %914 = vmatpush2.bf16.msra.mxu0 0
    %915 = vmatprep.subr.bf16.mxu0 0
    %916 = vmatpush2.bf16.msra.mxu0 0
    %917 = vmatprep.mubr.bf16.mxu0 0
    %918 = vmatmul.mubr.bf16.gmra.mxu0 %v880
    %v919 = vpop.f32.mrf.mxu0
    %v920 = vadd.f32 0.0, %v919
    %v921 = vpop.f32.mrf.mxu0
    %v922 = vpop.f32.mrf.mxu0
    %v923 = vpop.f32.mrf.mxu0
    %924 = vdwg.mxu0
    %v926 = vsel %vm654, %v728, 0
    %v929 = vsel %vm743, %v736, 0
    %931 = vmatprep.subr.bf16.mxu0 0
    %932 = vmatpush1.bf16.msra.mxu0 0
    %933 = vmatprep.subr.bf16.mxu0 0
    %934 = vmatpush1.bf16.msra.mxu0 0
    %935 = vmatprep.subr.bf16.mxu0 0
    %936 = vmatpush1.bf16.msra.mxu0 0
    %937 = vmatprep.subr.bf16.mxu0 0
    %938 = vmatpush1.bf16.msra.mxu0 0
    %939 = vmatprep.subr.bf16.mxu0 0
    %940 = vmatpush1.bf16.msra.mxu0 0
    %941 = vmatprep.subr.bf16.mxu0 0
    %942 = vmatpush1.bf16.msra.mxu0 0
    %943 = vmatprep.subr.bf16.mxu0 0
    %944 = vmatpush1.bf16.msra.mxu0 0
    %945 = vmatprep.subr.bf16.mxu0 0
    %946 = vmatpush1.bf16.msra.mxu0 %v929
    %947 = vmatprep.subr.bf16.mxu0 0
    %948 = vmatpush2.bf16.msra.mxu0 0
    %949 = vmatprep.subr.bf16.mxu0 0
    %950 = vmatpush2.bf16.msra.mxu0 0
    %951 = vmatprep.subr.bf16.mxu0 0
    %952 = vmatpush2.bf16.msra.mxu0 0
    %953 = vmatprep.subr.bf16.mxu0 0
    %954 = vmatpush2.bf16.msra.mxu0 0
    %955 = vmatprep.subr.bf16.mxu0 0
    %956 = vmatpush2.bf16.msra.mxu0 0
    %957 = vmatprep.subr.bf16.mxu0 0
    %958 = vmatpush2.bf16.msra.mxu0 0
    %959 = vmatprep.subr.bf16.mxu0 0
    %960 = vmatpush2.bf16.msra.mxu0 0
    %961 = vmatprep.subr.bf16.mxu0 0
    %962 = vmatpush2.bf16.msra.mxu0 0
    %963 = vmatprep.mubr.bf16.mxu0 0
    %964 = vmatmul.mubr.bf16.gmra.mxu0 %v926
    %v965 = vpop.f32.mrf.mxu0
    %v966 = vadd.f32 0.0, %v965
    %v967 = vpop.f32.mrf.mxu0
    %v968 = vpop.f32.mrf.mxu0
    %v969 = vpop.f32.mrf.mxu0
    %970 = vdwg.mxu0
    %v972 = vsel %vm654, %v729, 0
    %v975 = vsel %vm743, %v737, 0
    %977 = vmatprep.subr.bf16.mxu0 0
    %978 = vmatpush1.bf16.msra.mxu0 0
    %979 = vmatprep.subr.bf16.mxu0 0
    %980 = vmatpush1.bf16.msra.mxu0 0
    %981 = vmatprep.subr.bf16.mxu0 0
    %982 = vmatpush1.bf16.msra.mxu0 0
    %983 = vmatprep.subr.bf16.mxu0 0
    %984 = vmatpush1.bf16.msra.mxu0 0
    %985 = vmatprep.subr.bf16.mxu0 0
    %986 = vmatpush1.bf16.msra.mxu0 0
    %987 = vmatprep.subr.bf16.mxu0 0
    %988 = vmatpush1.bf16.msra.mxu0 0
    %989 = vmatprep.subr.bf16.mxu0 0
    %990 = vmatpush1.bf16.msra.mxu0 0
    %991 = vmatprep.subr.bf16.mxu0 0
    %992 = vmatpush1.bf16.msra.mxu0 %v975
    %993 = vmatprep.subr.bf16.mxu0 0
    %994 = vmatpush2.bf16.msra.mxu0 0
    %995 = vmatprep.subr.bf16.mxu0 0
    %996 = vmatpush2.bf16.msra.mxu0 0
    %997 = vmatprep.subr.bf16.mxu0 0
    %998 = vmatpush2.bf16.msra.mxu0 0
    %999 = vmatprep.subr.bf16.mxu0 0
    %1000 = vmatpush2.bf16.msra.mxu0 0
    %1001 = vmatprep.subr.bf16.mxu0 0
    %1002 = vmatpush2.bf16.msra.mxu0 0
    %1003 = vmatprep.subr.bf16.mxu0 0
    %1004 = vmatpush2.bf16.msra.mxu0 0
    %1005 = vmatprep.subr.bf16.mxu0 0
    %1006 = vmatpush2.bf16.msra.mxu0 0
    %1007 = vmatprep.subr.bf16.mxu0 0
    %1008 = vmatpush2.bf16.msra.mxu0 0
    %1009 = vmatprep.mubr.bf16.mxu0 0
    %1010 = vmatmul.mubr.bf16.gmra.mxu0 %v972
    %v1011 = vpop.f32.mrf.mxu0
    %v1012 = vadd.f32 0.0, %v1011
    %v1013 = vpop.f32.mrf.mxu0
    %v1014 = vpop.f32.mrf.mxu0
    %v1015 = vpop.f32.mrf.mxu0
    %1016 = vdwg.mxu0
    %v1018 = vsel %vm654, %v730, 0
    %v1021 = vsel %vm743, %v738, 0
    %1023 = vmatprep.subr.bf16.mxu0 0
    %1024 = vmatpush1.bf16.msra.mxu0 0
    %1025 = vmatprep.subr.bf16.mxu0 0
    %1026 = vmatpush1.bf16.msra.mxu0 0
    %1027 = vmatprep.subr.bf16.mxu0 0
    %1028 = vmatpush1.bf16.msra.mxu0 0
    %1029 = vmatprep.subr.bf16.mxu0 0
    %1030 = vmatpush1.bf16.msra.mxu0 0
    %1031 = vmatprep.subr.bf16.mxu0 0
    %1032 = vmatpush1.bf16.msra.mxu0 0
    %1033 = vmatprep.subr.bf16.mxu0 0
    %1034 = vmatpush1.bf16.msra.mxu0 0
    %1035 = vmatprep.subr.bf16.mxu0 0
    %1036 = vmatpush1.bf16.msra.mxu0 0
    %1037 = vmatprep.subr.bf16.mxu0 0
    %1038 = vmatpush1.bf16.msra.mxu0 %v1021
    %1039 = vmatprep.subr.bf16.mxu0 0
    %1040 = vmatpush2.bf16.msra.mxu0 0
    %1041 = vmatprep.subr.bf16.mxu0 0
    %1042 = vmatpush2.bf16.msra.mxu0 0
    %1043 = vmatprep.subr.bf16.mxu0 0
    %1044 = vmatpush2.bf16.msra.mxu0 0
    %1045 = vmatprep.subr.bf16.mxu0 0
    %1046 = vmatpush2.bf16.msra.mxu0 0
    %1047 = vmatprep.subr.bf16.mxu0 0
    %1048 = vmatpush2.bf16.msra.mxu0 0
    %1049 = vmatprep.subr.bf16.mxu0 0
    %1050 = vmatpush2.bf16.msra.mxu0 0
    %1051 = vmatprep.subr.bf16.mxu0 0
    %1052 = vmatpush2.bf16.msra.mxu0 0
    %1053 = vmatprep.subr.bf16.mxu0 0
    %1054 = vmatpush2.bf16.msra.mxu0 0
    %1055 = vmatprep.mubr.bf16.mxu0 0
    %1056 = vmatmul.mubr.bf16.gmra.mxu0 %v1018
    %v1057 = vpop.f32.mrf.mxu0
    %v1058 = vadd.f32 0.0, %v1057
    %v1059 = vpop.f32.mrf.mxu0
    %v1060 = vpop.f32.mrf.mxu0
    %v1061 = vpop.f32.mrf.mxu0
    %1062 = vdwg.mxu0
    %v1064 = vsel %vm654, %v731, 0
    %v1067 = vsel %vm743, %v739, 0
    %1069 = vmatprep.subr.bf16.mxu0 0
    %1070 = vmatpush1.bf16.msra.mxu0 0
    %1071 = vmatprep.subr.bf16.mxu0 0
    %1072 = vmatpush1.bf16.msra.mxu0 0
    %1073 = vmatprep.subr.bf16.mxu0 0
    %1074 = vmatpush1.bf16.msra.mxu0 0
    %1075 = vmatprep.subr.bf16.mxu0 0
    %1076 = vmatpush1.bf16.msra.mxu0 0
    %1077 = vmatprep.subr.bf16.mxu0 0
    %1078 = vmatpush1.bf16.msra.mxu0 0
    %1079 = vmatprep.subr.bf16.mxu0 0
    %1080 = vmatpush1.bf16.msra.mxu0 0
    %1081 = vmatprep.subr.bf16.mxu0 0
    %1082 = vmatpush1.bf16.msra.mxu0 0
    %1083 = vmatprep.subr.bf16.mxu0 0
    %1084 = vmatpush1.bf16.msra.mxu0 %v1067
    %1085 = vmatprep.subr.bf16.mxu0 0
    %1086 = vmatpush2.bf16.msra.mxu0 0
    %1087 = vmatprep.subr.bf16.mxu0 0
    %1088 = vmatpush2.bf16.msra.mxu0 0
    %1089 = vmatprep.subr.bf16.mxu0 0
    %1090 = vmatpush2.bf16.msra.mxu0 0
    %1091 = vmatprep.subr.bf16.mxu0 0
    %1092 = vmatpush2.bf16.msra.mxu0 0
    %1093 = vmatprep.subr.bf16.mxu0 0
    %1094 = vmatpush2.bf16.msra.mxu0 0
    %1095 = vmatprep.subr.bf16.mxu0 0
    %1096 = vmatpush2.bf16.msra.mxu0 0
    %1097 = vmatprep.subr.bf16.mxu0 0
    %1098 = vmatpush2.bf16.msra.mxu0 0
    %1099 = vmatprep.subr.bf16.mxu0 0
    %1100 = vmatpush2.bf16.msra.mxu0 0
    %1101 = vmatprep.mubr.bf16.mxu0 0
    %1102 = vmatmul.mubr.bf16.gmra.mxu0 %v1064
    %v1103 = vpop.f32.mrf.mxu0
    %v1104 = vadd.f32 0.0, %v1103
    %v1105 = vpop.f32.mrf.mxu0
    %v1106 = vpop.f32.mrf.mxu0
    %v1107 = vpop.f32.mrf.mxu0
    %1108 = vdwg.mxu0
    %v1109 = vld [vmem:[#allocation2] sm:$0xf]
    %v1110 = vld [vmem:[#allocation20] sm:$0xf]
    %v1111 = vld [vmem:[#allocation20 + $0x4] sm:$0xf]
    %v1112 = vld [vmem:[#allocation20 + $0x8] sm:$0xf]
    %v1113 = vld [vmem:[#allocation20 + $0xc] sm:$0xf]
    %v1114 = vld [vmem:[#allocation20 + $0x10] sm:$0xf]
    %v1115 = vld [vmem:[#allocation20 + $0x14] sm:$0xf]
    %v1116 = vld [vmem:[#allocation20 + $0x18] sm:$0xf]
    %v1117 = vld [vmem:[#allocation20 + $0x1c] sm:$0xf]
    %v1118 = vld [vmem:[#allocation20 + $0x20] sm:$0xf]
    %v1119 = vld [vmem:[#allocation20 + $0x24] sm:$0xf]
    %v1120 = vld [vmem:[#allocation20 + $0x28] sm:$0xf]
    %v1121 = vld [vmem:[#allocation20 + $0x2c] sm:$0xf]
    %v1122 = vpack.c.bf16 %v782, %v782
    %v1123 = vpack.c.bf16 %v828, %v828
    %v1124 = vpack.c.bf16 %v874, %v874
    %v1125 = vpack.c.bf16 %v920, %v920
    %v1126 = vpack.c.bf16 %v966, %v966
    %v1127 = vpack.c.bf16 %v1012, %v1012
    %v1128 = vpack.c.bf16 %v1058, %v1058
    %v1129 = vpack.c.bf16 %v1104, %v1104
    %v1130 = vld [vmem:[#allocation22] sm:$0xf]
    %v1131 = vld [vmem:[#allocation22 + $0x4] sm:$0xf]
    %v1132 = vld [vmem:[#allocation22 + $0x8] sm:$0xf]
    %v1133 = vld [vmem:[#allocation22 + $0xc] sm:$0xf]
    %v1134 = vld [vmem:[#allocation22 + $0x10] sm:$0xf]
    %v1135 = vld [vmem:[#allocation22 + $0x14] sm:$0xf]
    %v1136 = vld [vmem:[#allocation22 + $0x18] sm:$0xf]
    %v1137 = vld [vmem:[#allocation22 + $0x1c] sm:$0xf]
    %v1146 = vunpack.c.l.b16 %v1122
    %v1147 = vunpack.c.l.b16 %v1123
    %v1148 = vunpack.c.l.b16 %v1124
    %v1149 = vunpack.c.l.b16 %v1125
    %v1150 = vunpack.c.l.b16 %v1126
    %v1151 = vunpack.c.l.b16 %v1127
    %v1152 = vunpack.c.l.b16 %v1128
    %v1153 = vunpack.c.l.b16 %v1129
    %v1154 = vrot.slane %v1147, 7
    %v1155 = vsel %vm638, %v1154, %v1146
    %v1156 = vrot.slane %v1148, 6
    %v1157 = vsel %vm640, %v1156, %v1155
    %v1158 = vrot.slane %v1149, 5
    %v1159 = vsel %vm642, %v1158, %v1157
    %v1160 = vrot.slane %v1150, 4
    %v1161 = vsel %vm644, %v1160, %v1159
    %v1162 = vrot.slane %v1151, 3
    %v1163 = vsel %vm646, %v1162, %v1161
    %v1164 = vrot.slane %v1152, 2
    %v1165 = vsel %vm648, %v1164, %v1163
    %v1166 = vrot.slane %v1153, 1
    %v1167 = vsel %vm650, %v1166, %v1165
    %v1168 = vpack.c.b16 %v1167, %v1167
    %v1177 = vunpack.c.l.b16 %v1130
    %v1178 = vunpack.c.l.b16 %v1131
    %v1179 = vunpack.c.l.b16 %v1132
    %v1180 = vunpack.c.l.b16 %v1133
    %v1181 = vunpack.c.l.b16 %v1134
    %v1182 = vunpack.c.l.b16 %v1135
    %v1183 = vunpack.c.l.b16 %v1136
    %v1184 = vunpack.c.l.b16 %v1137
    %v1185 = vpack.c.b16 %v1178, %v1177
    %v1186 = vpack.c.b16 %v1180, %v1179
    %v1187 = vpack.c.b16 %v1182, %v1181
    %v1188 = vpack.c.b16 %v1184, %v1183
    %v1194 = vsel %vm566, %v1168, 0
    %1196 = vmatprep.subr.bf16.mxu0 0
    %1197 = vmatpush1.bf16.msra.mxu0 0
    %1198 = vmatprep.subr.bf16.mxu0 0
    %1199 = vmatpush1.bf16.msra.mxu0 0
    %1200 = vmatprep.subr.bf16.mxu0 0
    %1201 = vmatpush1.bf16.msra.mxu0 0
    %1202 = vmatprep.subr.bf16.mxu0 0
    %1203 = vmatpush1.bf16.msra.mxu0 0
    %1204 = vmatprep.subr.bf16.mxu0 0
    %1205 = vmatpush1.bf16.msra.mxu0 %v1188
    %1206 = vmatprep.subr.bf16.mxu0 0
    %1207 = vmatpush1.bf16.msra.mxu0 %v1187
    %1208 = vmatprep.subr.bf16.mxu0 0
    %1209 = vmatpush1.bf16.msra.mxu0 %v1186
    %1210 = vmatprep.subr.bf16.mxu0 0
    %1211 = vmatpush1.bf16.msra.mxu0 %v1185
    %1212 = vmatprep.subr.bf16.mxu0 0
    %1213 = vmatpush2.bf16.msra.mxu0 0
    %1214 = vmatprep.subr.bf16.mxu0 0
    %1215 = vmatpush2.bf16.msra.mxu0 0
    %1216 = vmatprep.subr.bf16.mxu0 0
    %1217 = vmatpush2.bf16.msra.mxu0 0
    %1218 = vmatprep.subr.bf16.mxu0 0
    %1219 = vmatpush2.bf16.msra.mxu0 0
    %1220 = vmatprep.subr.bf16.mxu0 0
    %1221 = vmatpush2.bf16.msra.mxu0 0
    %1222 = vmatprep.subr.bf16.mxu0 0
    %1223 = vmatpush2.bf16.msra.mxu0 0
    %1224 = vmatprep.subr.bf16.mxu0 0
    %1225 = vmatpush2.bf16.msra.mxu0 0
    %1226 = vmatprep.subr.bf16.mxu0 0
    %1227 = vmatpush2.bf16.msra.mxu0 0
    %1228 = vmatprep.mubr.bf16.mxu0 0
    %1229 = vmatmul.mubr.bf16.gmra.mxu0 %v1194
    %v1230 = vpop.f32.mrf.mxu0
    %v1231 = vadd.f32 0.0, %v1230
    %v1232 = vpop.f32.mrf.mxu0
    %v1233 = vpop.f32.mrf.mxu0
    %v1234 = vpop.f32.mrf.mxu0
    %1235 = vdwg.mxu0
    %v1248 = vunpack.c.l.b16 %v1110
    %v1249 = vunpack.c.l.b16 %v1111
    %v1250 = vunpack.c.l.b16 %v1112
    %v1251 = vunpack.c.l.b16 %v1113
    %v1252 = vunpack.c.l.b16 %v1114
    %v1253 = vunpack.c.l.b16 %v1115
    %v1254 = vunpack.c.l.b16 %v1116
    %v1255 = vunpack.c.l.b16 %v1117
    %v1256 = vunpack.c.l.b16 %v1118
    %v1257 = vunpack.c.l.b16 %v1119
    %v1258 = vunpack.c.l.b16 %v1120
    %v1259 = vunpack.c.l.b16 %v1121
    %v1260 = vpack.c.b16 %v1249, %v1248
    %v1261 = vpack.c.b16 %v1251, %v1250
    %v1262 = vpack.c.b16 %v1253, %v1252
    %v1263 = vpack.c.b16 %v1255, %v1254
    %v1264 = vpack.c.b16 %v1257, %v1256
    %v1265 = vpack.c.b16 %v1259, %v1258
    %vm1272 = vcmask 785408
    %v1274 = vsel %vm1272, %v1109, 0
    %1276 = vmatprep.subr.bf16.mxu0 0
    %1277 = vmatpush1.bf16.msra.mxu0 0
    %1278 = vmatprep.subr.bf16.mxu0 0
    %1279 = vmatpush1.bf16.msra.mxu0 0
    %1280 = vmatprep.subr.bf16.mxu0 0
    %1281 = vmatpush1.bf16.msra.mxu0 %v1265
    %1282 = vmatprep.subr.bf16.mxu0 0
    %1283 = vmatpush1.bf16.msra.mxu0 %v1264
    %1284 = vmatprep.subr.bf16.mxu0 0
    %1285 = vmatpush1.bf16.msra.mxu0 %v1263
    %1286 = vmatprep.subr.bf16.mxu0 0
    %1287 = vmatpush1.bf16.msra.mxu0 %v1262
    %1288 = vmatprep.subr.bf16.mxu0 0
    %1289 = vmatpush1.bf16.msra.mxu0 %v1261
    %1290 = vmatprep.subr.bf16.mxu0 0
    %1291 = vmatpush1.bf16.msra.mxu0 %v1260
    %1292 = vmatprep.subr.bf16.mxu0 0
    %1293 = vmatpush2.bf16.msra.mxu0 0
    %1294 = vmatprep.subr.bf16.mxu0 0
    %1295 = vmatpush2.bf16.msra.mxu0 0
    %1296 = vmatprep.subr.bf16.mxu0 0
    %1297 = vmatpush2.bf16.msra.mxu0 0
    %1298 = vmatprep.subr.bf16.mxu0 0
    %1299 = vmatpush2.bf16.msra.mxu0 0
    %1300 = vmatprep.subr.bf16.mxu0 0
    %1301 = vmatpush2.bf16.msra.mxu0 0
    %1302 = vmatprep.subr.bf16.mxu0 0
    %1303 = vmatpush2.bf16.msra.mxu0 0
    %1304 = vmatprep.subr.bf16.mxu0 0
    %1305 = vmatpush2.bf16.msra.mxu0 0
    %1306 = vmatprep.subr.bf16.mxu0 0
    %1307 = vmatpush2.bf16.msra.mxu0 0
    %1308 = vmatprep.mubr.bf16.mxu0 0
    %1309 = vmatmul.mubr.bf16.gmra.mxu0 %v1274
    %v1310 = vpop.f32.mrf.mxu0
    %v1311 = vadd.f32 %v1231, %v1310
    %v1312 = vpop.f32.mrf.mxu0
    %v1313 = vpop.f32.mrf.mxu0
    %v1314 = vpop.f32.mrf.mxu0
    %1315 = vdwg.mxu0
    %v1316 = vld [vmem:[#allocation23] sm:$0x1]
    %v1318 = vlaneseq
    %v1319 = vshrl.u32 %v1318, 7
    %v1320 = vsub.s32 0, %v1319
    %v1321 = vrot.slane %v1316, %v1320
    %v1323 = vadd.f32 %v1311, %v1321
    %v1324 = vxor.u32 %v1323, 2147483648
    %v1325 = vmul.f32 %v1324, 1.442695
    %v1326 = vpow.pop %v1325
    %v1327 = vadd.f32 %v1326, 1.0
    %v1328 = vrcp.pop %v1327
    %v1329 = vmul.f32 1.0, %v1328
    %v1330 = vtanh.pop %v1323
    %v1331 = vld [vmem:[#allocation3] sm:$0xff]
    %1333 = vrot.lane.b32.xlu0 %v1331, 32
    %v1334 = vpop.permute.xlu0 %1333
    %v1336 = vmul.f32 %v1329, %v1334
    %1338 = vrot.lane.b32.xlu0 %v1330, 64
    %v1339 = vpop.permute.xlu0 %1338
    %v1341 = vmul.f32 %v1329, %v1339
    %1343 = vrot.lane.b32.xlu0 %v1341, 32
    %v1344 = vpop.permute.xlu0 %1343
    %v1346 = vadd.f32 %v1336, %v1344
    %v1347 = vtanh.pop %v1346
    %1349 = vrot.lane.b32.xlu0 %v1347, 64
    %v1350 = vpop.permute.xlu0 %1349
    %v1352 = vmul.f32 %v1329, %v1350
    %v1353 = vpack.c.bf16 %v1352, %v1352
    %v1354 = vld [vmem:[%s14] sm:$0xf]
    %v1355 = vld [vmem:[%s14 + $0x4] sm:$0xf]
    %v1356 = vld [vmem:[%s14 + $0x8] sm:$0xf]
    %v1357 = vld [vmem:[%s14 + $0xc] sm:$0xf]
    %v1358 = vld [vmem:[%s15] sm:$0x1]
    %v1360 = vlaneseq
    %v1361 = vshrl.u32 %v1360, 7
    %v1362 = vsub.s32 0, %v1361
    %v1363 = vrot.slane %v1358, %v1362
    %1366 = vrot.lane.b32.xlu0 %v1353, 32
    %v1367 = vpop.permute.xlu0 %1366
    %v1372 = vunpack.c.l.b16 %v1354
    %v1373 = vunpack.c.l.b16 %v1355
    %v1374 = vunpack.c.l.b16 %v1356
    %v1375 = vunpack.c.l.b16 %v1357
    %v1376 = vpack.c.b16 %v1373, %v1372
    %v1377 = vpack.c.b16 %v1375, %v1374
    %v1381 = vsel %vm393, %v1367, 0
    %1383 = vmatprep.subr.bf16.mxu0 0
    %1384 = vmatpush1.bf16.msra.mxu0 0
    %1385 = vmatprep.subr.bf16.mxu0 0
    %1386 = vmatpush1.bf16.msra.mxu0 0
    %1387 = vmatprep.subr.bf16.mxu0 0
    %1388 = vmatpush1.bf16.msra.mxu0 0
    %1389 = vmatprep.subr.bf16.mxu0 0
    %1390 = vmatpush1.bf16.msra.mxu0 0
    %1391 = vmatprep.subr.bf16.mxu0 0
    %1392 = vmatpush1.bf16.msra.mxu0 0
    %1393 = vmatprep.subr.bf16.mxu0 0
    %1394 = vmatpush1.bf16.msra.mxu0 0
    %1395 = vmatprep.subr.bf16.mxu0 0
    %1396 = vmatpush1.bf16.msra.mxu0 %v1377
    %1397 = vmatprep.subr.bf16.mxu0 0
    %1398 = vmatpush1.bf16.msra.mxu0 %v1376
    %1399 = vmatprep.subr.bf16.mxu0 0
    %1400 = vmatpush2.bf16.msra.mxu0 0
    %1401 = vmatprep.subr.bf16.mxu0 0
    %1402 = vmatpush2.bf16.msra.mxu0 0
    %1403 = vmatprep.subr.bf16.mxu0 0
    %1404 = vmatpush2.bf16.msra.mxu0 0
    %1405 = vmatprep.subr.bf16.mxu0 0
    %1406 = vmatpush2.bf16.msra.mxu0 0
    %1407 = vmatprep.subr.bf16.mxu0 0
    %1408 = vmatpush2.bf16.msra.mxu0 0
    %1409 = vmatprep.subr.bf16.mxu0 0
    %1410 = vmatpush2.bf16.msra.mxu0 0
    %1411 = vmatprep.subr.bf16.mxu0 0
    %1412 = vmatpush2.bf16.msra.mxu0 0
    %1413 = vmatprep.subr.bf16.mxu0 0
    %1414 = vmatpush2.bf16.msra.mxu0 0
    %1415 = vmatprep.mubr.bf16.mxu0 0
    %1416 = vmatmul.mubr.bf16.gmra.mxu0 %v1381
    %v1417 = vpop.f32.mrf.mxu0
    %v1418 = vadd.f32 %v1363, %v1417
    %v1419 = vpop.f32.mrf.mxu0
    %v1420 = vpop.f32.mrf.mxu0
    %v1421 = vpop.f32.mrf.mxu0
    %1422 = vdwg.mxu0
    %v1423 = vld [vmem:[#allocation8] sm:$0xff]
    %v1424 = vmul.f32 %v1418, 0.5
    %v1425 = vmul.f32 %v1424, 1.442695
    %v1426 = vpow.pop %v1425
    %1428 = vrot.lane.b32.xlu0 %v1426, 96
    %v1429 = vpop.permute.xlu0 %1428
    %v1431 = vmul.f32 %v1423, %v1429
    %v1432 = vadd.f32 %v1431, %v1418
    %v1433 = vpack.c.bf16 %v1432, %v1432
    %v1435 = vunpack.c.l.b16 %v1433
    %v1436 = vpack.c.b16 %v1435, %v1435
    %1437 = vrot.lane.b32.xlu0 %v1436, 32
    %v1438 = vpop.permute.xlu0 %1437
    %vm1440 = vcmask 519424
    %1441 = vst.msk [vmem:[#allocation2] sm:$0xf] %vm1440, %v1438
    %v1442 = vunpack.c.l.b16 %v1353
    %v1443 = vpack.c.b16 %v1442, %v1442
    %1444 = vrot.lane.b32.xlu0 %v1443, 96
    %v1445 = vpop.permute.xlu0 %1444
    %vm1447 = vcmask 781824
    %1448 = vst.msk [vmem:[#allocation2] sm:$0xf] %vm1447, %v1445
    %1450 = vrot.lane.b32.xlu0 %v1346, 96
    %v1451 = vpop.permute.xlu0 %1450
    %1453 = vst.msk [vmem:[#allocation3] sm:$0xff] %vm393, %v1451
    %1454 = vst.msk [vmem:[#allocation25] sm:$0xff] %vm393, %v1418
    %vm1455 = vcmask 523520
    %1456 = vst.msk [vmem:[#allocation25] sm:$0xff] %vm1455, %v1418
    %1458 = vrot.lane.b32.xlu0 %v1432, 64
    %v1459 = vpop.permute.xlu0 %1458
    %vm1461 = vcmask 785920
    %1462 = vst.msk [vmem:[#allocation25] sm:$0xff] %vm1461, %v1459
    %vm1463 = vcmask 1048320
    %1464 = vst.msk [vmem:[#allocation25] sm:$0xff] %vm1463, %v1352
    %1465 = vst.msk [vmem:[#allocation25 + $0x8] sm:$0xff] %vm393, %v1451
    %1466 = vrot.lane.b32.xlu0 %v665, 32
    %v1467 = vpop.permute.xlu0 %1466
    %vm1469 = vcmask 326912
    %1470 = vst.msk [vmem:[#allocation25 + $0x8] sm:$0xff] %vm1469, %v1467
    %vm1471 = vcmask 1047872
    %1472 = vst.msk [vmem:[#allocation25 + $0x8] sm:$0xff] %vm1471, 0.0
    // Predicated region
    $region118: #{tpu_custom_call.1} parent=1 // pred_check
      _
    $region119: #{tpu_custom_call.1} parent=1 // pred_check_branch
      %1474 = sbr.rel (0) target = $region121
    $region120: #{tpu_custom_call.1} parent=1 // pred_region
      %s1476 = ssub.s32 256, 256
      %1477 = vsyncadd [#allocation7], %s1476
      %s1479 = sshll.u32 [#allocation25], 4
      %s1480 = int_to_ptr.vmem [resolvable:$true] %s1479
      %1482 = dma.vmem_to_hbm [thread:$0]  %s1480, 256, %s16, [#allocation7]
    $region121: #{tpu_custom_call.1} parent=1 // pred_fallthru
      _
    // Predicated region
    $region122: #{tpu_custom_call.1} parent=1 // pred_check
      _
    $region123: #{tpu_custom_call.1} parent=1 // pred_check_branch
      %1484 = sbr.rel (0) target = $region125
    $region124: #{tpu_custom_call.1} parent=1 // pred_region
      %1485 = dma.done [#allocation7], 256
    $region125: #{tpu_custom_call.1} parent=1 // pred_fallthru
      _
    %1486 = vsyncpa [#allocation6], 1
    %1487 = vsyncpa [#allocation9], 1
    %1488 = vsyncpa [#allocation12], 1
    %1489 = vsyncpa [#allocation15], 1
    %1490 = vsyncpa [#allocation18], 1
    %1491 = vsyncpa [#allocation21], 1
    %1492 = vsyncpa [#allocation24], 1
    %1493 = vsyncpa [#allocation7], 1

</llo_original>
